<compile_context>
chip_gen: v7x
topology: tpu7x:2x2x1
jax: 0.10.0
libtpu: 0.0.40
codegen_flags: <defaults>
</compile_context>

<pallas_src>
import functools

import jax
import jax.numpy as jnp
from jax.experimental import pallas as pl
from jax.experimental.pallas import tpu as pltpu


def _autoencoder_kernel(
    x_ref,
    ew0_ref, eb0_ref, ew1_ref, eb1_ref, ew2_ref, eb2_ref,
    dw0_ref, db0_ref, dw1_ref, db1_ref, dw2_ref, db2_ref,
    enc_ref, dec_ref,
    *, compute_dtype,
):
    """Fused encoder + decoder MLP for one (TB, input_dim) batch tile."""
    cd = compute_dtype
    x = x_ref[...].astype(cd)  # no-op when cd == f32

    # ---- encoder: Linear -> ReLU -> Linear -> ReLU -> Linear ----
    h = jnp.maximum(
        jnp.dot(x, ew0_ref[...], preferred_element_type=jnp.float32) + eb0_ref[...],
        0.0)
    h = jnp.maximum(
        jnp.dot(h.astype(cd), ew1_ref[...],
                preferred_element_type=jnp.float32) + eb1_ref[...],
        0.0)
    enc = jnp.dot(h.astype(cd), ew2_ref[...],
                  preferred_element_type=jnp.float32) + eb2_ref[...]
    # Store only the real bottleneck columns (block last dim == full array dim).
    enc_ref[...] = enc.astype(enc_ref.dtype)

    # ---- decoder: Linear -> ReLU -> Linear -> ReLU -> Linear ----
    h = jnp.maximum(
        jnp.dot(enc.astype(cd), dw0_ref[...],
                preferred_element_type=jnp.float32) + db0_ref[...],
        0.0)
    h = jnp.maximum(
        jnp.dot(h.astype(cd), dw1_ref[...],
                preferred_element_type=jnp.float32) + db1_ref[...],
        0.0)
    dec = jnp.dot(h.astype(cd), dw2_ref[...],
                  preferred_element_type=jnp.float32) + db2_ref[...]
    dec_ref[...] = dec.astype(dec_ref.dtype)


def _choose_batch_tile(batch, target):
    """Largest divisor of batch that is a multiple of 8 and <= target.

    Returns None if no such divisor exists (ragged fallback with padding).
    """
    if batch <= target:
        return batch  # single full-array tile (always legal)
    hi = min(target, batch)
    for tb in range(hi - (hi % 8), 7, -8):
        if batch % tb == 0:
            return tb
    return None


@functools.partial(jax.jit, static_argnames=("block_batch", "use_bf16"))
def autoencoder_forward(x, params, block_batch=1024, use_bf16=False):
    """Returns (encoded, decoded), matching DimensionReducerAutoencoder.forward."""
    (ew0, eb0, ew1, eb1, ew2, eb2,
     dw0, db0, dw1, db1, dw2, db2) = params

    batch, input_dim = x.shape
    h1 = ew0.shape[1]
    h2 = ew1.shape[1]
    output_dim = ew2.shape[1]

    # ---- batch tiling: prefer a divisor tile (no padding, no output slice) ----
    tb = _choose_batch_tile(batch, block_batch)
    if tb is not None:
        n_tiles = batch // tb
        padded_batch = batch
        x_in = x
        needs_slice = False
    else:
        # Ragged fallback: pad the batch (rare; only when no multiple-of-8
        # divisor of batch is <= block_batch).
        tb = min(block_batch, max(8, block_batch))
        n_tiles = -(-batch // tb)
        padded_batch = n_tiles * tb
        x_in = jnp.pad(x, ((0, padded_batch - batch), (0, 0)))
        needs_slice = True

    # ---- optional bf16 matmul inputs (f32 accumulation) ----
    # TODO(synk): pre-cast / cache bf16 weights outside the jitted forward for
    # repeated calls instead of casting per invocation.
    compute_dtype = jnp.bfloat16 if use_bf16 else jnp.float32
    if use_bf16:
        cast = lambda w: w.astype(jnp.bfloat16)
        ew0c, ew1c, ew2c = cast(ew0), cast(ew1), cast(ew2)
        dw0c, dw1c, dw2c = cast(dw0), cast(dw1), cast(dw2)
    else:
        ew0c, ew1c, ew2c = ew0, ew1, ew2
        dw0c, dw1c, dw2c = dw0, dw1, dw2

    weights = (ew0c, eb0, ew1c, eb1, ew2c, eb2,
               dw0c, db0, dw1c, db1, dw2c, db2)

    x_spec = pl.BlockSpec((tb, input_dim), lambda i: (i, 0))
    # Constant index_map -> weights DMA'd once and kept VMEM-resident.
    w_specs = [pl.BlockSpec(w.shape, lambda i: (0, 0)) for w in weights]
    enc_spec = pl.BlockSpec((tb, output_dim), lambda i: (i, 0))
    dec_spec = pl.BlockSpec((tb, input_dim), lambda i: (i, 0))

    # ---- VMEM budget: actual tile footprint + headroom, capped < v7x 64 MiB ----
    elt = 2 if use_bf16 else 4
    tile_io_bytes = 2 * 4 * tb * (2 * input_dim + output_dim)      # x+dec+enc, 2-buf
    weight_bytes = 2 * sum(int(w.size) * (elt if w.ndim == 2 else 4)
                           for w in weights)
    interm_bytes = 2 * 4 * tb * (h1 + h2)                           # activations
    vmem_needed = tile_io_bytes + weight_bytes + interm_bytes
    vmem_limit = int(min(max(vmem_needed + (8 << 20), 32 << 20), 60 << 20))

    flops = 2 * padded_batch * (
        input_dim * h1 + h1 * h2 + h2 * output_dim
        + output_dim * h2 + h2 * h1 + h1 * input_dim)
    bytes_accessed = (
        4 * padded_batch * input_dim                         # x
        + sum(int(w.size) * (elt if w.ndim == 2 else 4) for w in weights)
        + 4 * padded_batch * output_dim                      # enc
        + 4 * padded_batch * input_dim)                      # dec

    enc_o, dec_o = pl.pallas_call(
        functools.partial(_autoencoder_kernel, compute_dtype=compute_dtype),
        grid=(n_tiles,),
        in_specs=[x_spec] + w_specs,
        out_specs=(enc_spec, dec_spec),
        out_shape=(
            jax.ShapeDtypeStruct((padded_batch, output_dim), jnp.float32),
            jax.ShapeDtypeStruct((padded_batch, input_dim), jnp.float32),
        ),
        compiler_params=pltpu.CompilerParams(
            dimension_semantics=("parallel",),   # megacore sharding on v7x
            vmem_limit_bytes=vmem_limit,
        ),
        cost_estimate=pl.CostEstimate(
            flops=flops, transcendentals=0, bytes_accessed=bytes_accessed),
    )(x_in, *weights)

    if needs_slice:
        return enc_o[:batch], dec_o[:batch]
    return enc_o, dec_o


def init_params(key, input_dim, output_dim, hidden_layers=None):
    """Parameter init mirroring the module's layer shapes.

    Weights stored as [in_dim, out_dim] (transposed vs. PyTorch), biases as
    [1, out_dim].
    """
    if hidden_layers is None:
        hidden_layers = [min(input_dim, output_dim * 4), output_dim * 2]
    h1, h2 = hidden_layers

    dims = [
        (input_dim, h1), (h1, h2), (h2, output_dim),   # encoder
        (output_dim, h2), (h2, h1), (h1, input_dim),   # decoder
    ]
    params = []
    for (fan_in, fan_out) in dims:
        key, wk, bk = jax.random.split(key, 3)
        bound = 1.0 / jnp.sqrt(jnp.float32(fan_in))  # PyTorch Linear default range
        w = jax.random.uniform(wk, (fan_in, fan_out), jnp.float32, -bound, bound)
        b = jax.random.uniform(bk, (1, fan_out), jnp.float32, -bound, bound)
        params.extend([w, b])
    return tuple(params), hidden_layers


def reference_forward(x, params):
    """Plain-JAX reference for sanity checking the kernel."""
    (ew0, eb0, ew1, eb1, ew2, eb2,
     dw0, db0, dw1, db1, dw2, db2) = params
    h = jnp.maximum(x @ ew0 + eb0, 0.0)
    h = jnp.maximum(h @ ew1 + eb1, 0.0)
    enc = h @ ew2 + eb2
    h = jnp.maximum(enc @ dw0 + db0, 0.0)
    h = jnp.maximum(h @ dw1 + db1, 0.0)
    dec = h @ dw2 + db2
    return enc, dec


if __name__ == "__main__":
    key = jax.random.PRNGKey(0)

    batch = 512        # small, but exercises the multi-tile grid (4 tiles @ 128)
    input_dim = 128
    output_dim = 32    # -> hidden_layers = [min(128, 128), 64] = [128, 64]

    key, pkey, xkey = jax.random.split(key, 3)
    params, hidden_layers = init_params(pkey, input_dim, output_dim)

    x = jax.random.normal(xkey, (batch, input_dim), jnp.float32)

    # Main path: divisor tile, no padding, no output slicing.
    enc, dec = autoencoder_forward(x, params, block_batch=128)
    enc, dec = jax.block_until_ready((enc, dec))

    enc_ref, dec_ref = reference_forward(x, params)
    assert enc.shape == (batch, output_dim)
    assert dec.shape == (batch, input_dim)
    assert jnp.allclose(enc, enc_ref, atol=1e-3, rtol=1e-3)
    assert jnp.allclose(dec, dec_ref, atol=1e-3, rtol=1e-3)

    # Ragged fallback path: batch with no multiple-of-8 divisor <= tile target.
    xr = x[:300]
    enc_r, dec_r = autoencoder_forward(xr, params, block_batch=128)
    enc_r, dec_r = jax.block_until_ready((enc_r, dec_r))
    assert enc_r.shape == (300, output_dim)
    assert dec_r.shape == (300, input_dim)
    assert jnp.allclose(enc_r, enc_ref[:300], atol=1e-3, rtol=1e-3)
    assert jnp.allclose(dec_r, dec_ref[:300], atol=1e-3, rtol=1e-3)

    print("KERNEL_OK")
</pallas_src>

<mosaic_0001>
module attributes {stable_mosaic.version = 11 : i64} {
  func.func @_autoencoder_kernel(%arg0: i32, %arg1: memref<128x128xf32, #tpu.memory_space<vmem>>, %arg2: memref<128x128xf32, #tpu.memory_space<vmem>>, %arg3: memref<1x128xf32, #tpu.memory_space<vmem>>, %arg4: memref<128x64xf32, #tpu.memory_space<vmem>>, %arg5: memref<1x64xf32, #tpu.memory_space<vmem>>, %arg6: memref<64x32xf32, #tpu.memory_space<vmem>>, %arg7: memref<1x32xf32, #tpu.memory_space<vmem>>, %arg8: memref<32x64xf32, #tpu.memory_space<vmem>>, %arg9: memref<1x64xf32, #tpu.memory_space<vmem>>, %arg10: memref<64x128xf32, #tpu.memory_space<vmem>>, %arg11: memref<1x128xf32, #tpu.memory_space<vmem>>, %arg12: memref<128x128xf32, #tpu.memory_space<vmem>>, %arg13: memref<1x128xf32, #tpu.memory_space<vmem>>, %arg14: memref<128x32xf32, #tpu.memory_space<vmem>>, %arg15: memref<128x128xf32, #tpu.memory_space<vmem>>) attributes {dimension_semantics = [#tpu.dimension_semantics<parallel>], iteration_bounds = array<i64: 4>, scalar_prefetch = 0 : i64, scratch_operands = 0 : i64, tpu.core_type = #tpu.core_type<tc>, window_params = [{transform_indices = @transform_0, window_bounds = array<i64: 128, 128>}, {pipeline_mode = #tpu.pipeline_mode<synchronous>, transform_indices = @transform_1, window_bounds = array<i64: 128, 128>}, {pipeline_mode = #tpu.pipeline_mode<synchronous>, transform_indices = @transform_2, window_bounds = array<i64: 1, 128>}, {pipeline_mode = #tpu.pipeline_mode<synchronous>, transform_indices = @transform_3, window_bounds = array<i64: 128, 64>}, {pipeline_mode = #tpu.pipeline_mode<synchronous>, transform_indices = @transform_4, window_bounds = array<i64: 1, 64>}, {pipeline_mode = #tpu.pipeline_mode<synchronous>, transform_indices = @transform_5, window_bounds = array<i64: 64, 32>}, {pipeline_mode = #tpu.pipeline_mode<synchronous>, transform_indices = @transform_6, window_bounds = array<i64: 1, 32>}, {pipeline_mode = #tpu.pipeline_mode<synchronous>, transform_indices = @transform_7, window_bounds = array<i64: 32, 64>}, {pipeline_mode = #tpu.pipeline_mode<synchronous>, transform_indices = @transform_8, window_bounds = array<i64: 1, 64>}, {pipeline_mode = #tpu.pipeline_mode<synchronous>, transform_indices = @transform_9, window_bounds = array<i64: 64, 128>}, {pipeline_mode = #tpu.pipeline_mode<synchronous>, transform_indices = @transform_10, window_bounds = array<i64: 1, 128>}, {pipeline_mode = #tpu.pipeline_mode<synchronous>, transform_indices = @transform_11, window_bounds = array<i64: 128, 128>}, {pipeline_mode = #tpu.pipeline_mode<synchronous>, transform_indices = @transform_12, window_bounds = array<i64: 1, 128>}, {transform_indices = @transform_13, window_bounds = array<i64: 128, 32>}, {transform_indices = @transform_14, window_bounds = array<i64: 128, 128>}]} {
    %c0 = arith.constant 0 : index
    %c0_0 = arith.constant 0 : index
    %0 = vector.load %arg1[%c0, %c0_0] : memref<128x128xf32, #tpu.memory_space<vmem>>, vector<128x128xf32>
    %c0_1 = arith.constant 0 : index
    %c0_2 = arith.constant 0 : index
    %1 = vector.load %arg2[%c0_1, %c0_2] : memref<128x128xf32, #tpu.memory_space<vmem>>, vector<128x128xf32>
    %cst = arith.constant dense<0.000000e+00> : vector<128x128xf32>
    %2 = tpu.matmul %0, %1, %cst {dimension_numbers = #tpu.dot_dimension_numbers<[1], [0], [0], [1], [0, 0, 1, 1], [], []>} : vector<128x128xf32>, vector<128x128xf32>, vector<128x128xf32> -> vector<128x128xf32>
    %c0_3 = arith.constant 0 : index
    %c0_4 = arith.constant 0 : index
    %3 = vector.load %arg3[%c0_3, %c0_4] : memref<1x128xf32, #tpu.memory_space<vmem>>, vector<1x128xf32>
    %4 = vector.broadcast %3 : vector<1x128xf32> to vector<128x128xf32>
    %5 = arith.addf %2, %4 : vector<128x128xf32>
    %cst_5 = arith.constant 0.000000e+00 : f32
    %6 = vector.broadcast %cst_5 : f32 to vector<128x128xf32>
    %7 = arith.maximumf %5, %6 : vector<128x128xf32>
    %c0_6 = arith.constant 0 : index
    %c0_7 = arith.constant 0 : index
    %8 = vector.load %arg4[%c0_6, %c0_7] : memref<128x64xf32, #tpu.memory_space<vmem>>, vector<128x64xf32>
    %cst_8 = arith.constant dense<0.000000e+00> : vector<128x64xf32>
    %9 = tpu.matmul %7, %8, %cst_8 {dimension_numbers = #tpu.dot_dimension_numbers<[1], [0], [0], [1], [0, 0, 1, 1], [], []>} : vector<128x128xf32>, vector<128x64xf32>, vector<128x64xf32> -> vector<128x64xf32>
    %c0_9 = arith.constant 0 : index
    %c0_10 = arith.constant 0 : index
    %10 = vector.load %arg5[%c0_9, %c0_10] : memref<1x64xf32, #tpu.memory_space<vmem>>, vector<1x64xf32>
    %11 = vector.broadcast %10 : vector<1x64xf32> to vector<128x64xf32>
    %12 = arith.addf %9, %11 : vector<128x64xf32>
    %cst_11 = arith.constant 0.000000e+00 : f32
    %13 = vector.broadcast %cst_11 : f32 to vector<128x64xf32>
    %14 = arith.maximumf %12, %13 : vector<128x64xf32>
    %c0_12 = arith.constant 0 : index
    %c0_13 = arith.constant 0 : index
    %15 = vector.load %arg6[%c0_12, %c0_13] : memref<64x32xf32, #tpu.memory_space<vmem>>, vector<64x32xf32>
    %cst_14 = arith.constant dense<0.000000e+00> : vector<128x32xf32>
    %16 = tpu.matmul %14, %15, %cst_14 {dimension_numbers = #tpu.dot_dimension_numbers<[1], [0], [0], [1], [0, 0, 1, 1], [], []>} : vector<128x64xf32>, vector<64x32xf32>, vector<128x32xf32> -> vector<128x32xf32>
    %c0_15 = arith.constant 0 : index
    %c0_16 = arith.constant 0 : index
    %17 = vector.load %arg7[%c0_15, %c0_16] : memref<1x32xf32, #tpu.memory_space<vmem>>, vector<1x32xf32>
    %18 = vector.broadcast %17 : vector<1x32xf32> to vector<128x32xf32>
    %19 = arith.addf %16, %18 : vector<128x32xf32>
    %c0_17 = arith.constant 0 : index
    %c0_18 = arith.constant 0 : index
    %20 = vector.load %arg14[%c0_17, %c0_18] : memref<128x32xf32, #tpu.memory_space<vmem>>, vector<128x32xf32>
    tpu.vector_store %arg14[%c0_17, %c0_18], %19 {strides = array<i32>} : memref<128x32xf32, #tpu.memory_space<vmem>>, vector<128x32xf32>,
    %c0_19 = arith.constant 0 : index
    %c0_20 = arith.constant 0 : index
    %21 = vector.load %arg8[%c0_19, %c0_20] : memref<32x64xf32, #tpu.memory_space<vmem>>, vector<32x64xf32>
    %cst_21 = arith.constant dense<0.000000e+00> : vector<128x64xf32>
    %22 = tpu.matmul %19, %21, %cst_21 {dimension_numbers = #tpu.dot_dimension_numbers<[1], [0], [0], [1], [0, 0, 1, 1], [], []>} : vector<128x32xf32>, vector<32x64xf32>, vector<128x64xf32> -> vector<128x64xf32>
    %c0_22 = arith.constant 0 : index
    %c0_23 = arith.constant 0 : index
    %23 = vector.load %arg9[%c0_22, %c0_23] : memref<1x64xf32, #tpu.memory_space<vmem>>, vector<1x64xf32>
    %24 = vector.broadcast %23 : vector<1x64xf32> to vector<128x64xf32>
    %25 = arith.addf %22, %24 : vector<128x64xf32>
    %cst_24 = arith.constant 0.000000e+00 : f32
    %26 = vector.broadcast %cst_24 : f32 to vector<128x64xf32>
    %27 = arith.maximumf %25, %26 : vector<128x64xf32>
    %c0_25 = arith.constant 0 : index
    %c0_26 = arith.constant 0 : index
    %28 = vector.load %arg10[%c0_25, %c0_26] : memref<64x128xf32, #tpu.memory_space<vmem>>, vector<64x128xf32>
    %cst_27 = arith.constant dense<0.000000e+00> : vector<128x128xf32>
    %29 = tpu.matmul %27, %28, %cst_27 {dimension_numbers = #tpu.dot_dimension_numbers<[1], [0], [0], [1], [0, 0, 1, 1], [], []>} : vector<128x64xf32>, vector<64x128xf32>, vector<128x128xf32> -> vector<128x128xf32>
    %c0_28 = arith.constant 0 : index
    %c0_29 = arith.constant 0 : index
    %30 = vector.load %arg11[%c0_28, %c0_29] : memref<1x128xf32, #tpu.memory_space<vmem>>, vector<1x128xf32>
    %31 = vector.broadcast %30 : vector<1x128xf32> to vector<128x128xf32>
    %32 = arith.addf %29, %31 : vector<128x128xf32>
    %cst_30 = arith.constant 0.000000e+00 : f32
    %33 = vector.broadcast %cst_30 : f32 to vector<128x128xf32>
    %34 = arith.maximumf %32, %33 : vector<128x128xf32>
    %c0_31 = arith.constant 0 : index
    %c0_32 = arith.constant 0 : index
    %35 = vector.load %arg12[%c0_31, %c0_32] : memref<128x128xf32, #tpu.memory_space<vmem>>, vector<128x128xf32>
    %cst_33 = arith.constant dense<0.000000e+00> : vector<128x128xf32>
    %36 = tpu.matmul %34, %35, %cst_33 {dimension_numbers = #tpu.dot_dimension_numbers<[1], [0], [0], [1], [0, 0, 1, 1], [], []>} : vector<128x128xf32>, vector<128x128xf32>, vector<128x128xf32> -> vector<128x128xf32>
    %c0_34 = arith.constant 0 : index
    %c0_35 = arith.constant 0 : index
    %37 = vector.load %arg13[%c0_34, %c0_35] : memref<1x128xf32, #tpu.memory_space<vmem>>, vector<1x128xf32>
    %38 = vector.broadcast %37 : vector<1x128xf32> to vector<128x128xf32>
    %39 = arith.addf %36, %38 : vector<128x128xf32>
    %c0_36 = arith.constant 0 : index
    %c0_37 = arith.constant 0 : index
    %40 = vector.load %arg15[%c0_36, %c0_37] : memref<128x128xf32, #tpu.memory_space<vmem>>, vector<128x128xf32>
    tpu.vector_store %arg15[%c0_36, %c0_37], %39 {strides = array<i32>} : memref<128x128xf32, #tpu.memory_space<vmem>>, vector<128x128xf32>,
    return
  }
  func.func @transform_0(%arg0: i32) -> (i32, i32) {
    %c0_i32 = arith.constant 0 : i32
    %c0_i32_0 = arith.constant 0 : i32
    return %arg0, %c0_i32 : i32, i32
  }
  func.func @transform_1(%arg0: i32) -> (i32, i32) {
    %c0_i32 = arith.constant 0 : i32
    %c0_i32_0 = arith.constant 0 : i32
    %c0_i32_1 = arith.constant 0 : i32
    return %c0_i32, %c0_i32_0 : i32, i32
  }
  func.func @transform_2(%arg0: i32) -> (i32, i32) {
    %c0_i32 = arith.constant 0 : i32
    %c0_i32_0 = arith.constant 0 : i32
    %c0_i32_1 = arith.constant 0 : i32
    return %c0_i32, %c0_i32_0 : i32, i32
  }
  func.func @transform_3(%arg0: i32) -> (i32, i32) {
    %c0_i32 = arith.constant 0 : i32
    %c0_i32_0 = arith.constant 0 : i32
    %c0_i32_1 = arith.constant 0 : i32
    return %c0_i32, %c0_i32_0 : i32, i32
  }
  func.func @transform_4(%arg0: i32) -> (i32, i32) {
    %c0_i32 = arith.constant 0 : i32
    %c0_i32_0 = arith.constant 0 : i32
    %c0_i32_1 = arith.constant 0 : i32
    return %c0_i32, %c0_i32_0 : i32, i32
  }
  func.func @transform_5(%arg0: i32) -> (i32, i32) {
    %c0_i32 = arith.constant 0 : i32
    %c0_i32_0 = arith.constant 0 : i32
    %c0_i32_1 = arith.constant 0 : i32
    return %c0_i32, %c0_i32_0 : i32, i32
  }
  func.func @transform_6(%arg0: i32) -> (i32, i32) {
    %c0_i32 = arith.constant 0 : i32
    %c0_i32_0 = arith.constant 0 : i32
    %c0_i32_1 = arith.constant 0 : i32
    return %c0_i32, %c0_i32_0 : i32, i32
  }
  func.func @transform_7(%arg0: i32) -> (i32, i32) {
    %c0_i32 = arith.constant 0 : i32
    %c0_i32_0 = arith.constant 0 : i32
    %c0_i32_1 = arith.constant 0 : i32
    return %c0_i32, %c0_i32_0 : i32, i32
  }
  func.func @transform_8(%arg0: i32) -> (i32, i32) {
    %c0_i32 = arith.constant 0 : i32
    %c0_i32_0 = arith.constant 0 : i32
    %c0_i32_1 = arith.constant 0 : i32
    return %c0_i32, %c0_i32_0 : i32, i32
  }
  func.func @transform_9(%arg0: i32) -> (i32, i32) {
    %c0_i32 = arith.constant 0 : i32
    %c0_i32_0 = arith.constant 0 : i32
    %c0_i32_1 = arith.constant 0 : i32
    return %c0_i32, %c0_i32_0 : i32, i32
  }
  func.func @transform_10(%arg0: i32) -> (i32, i32) {
    %c0_i32 = arith.constant 0 : i32
    %c0_i32_0 = arith.constant 0 : i32
    %c0_i32_1 = arith.constant 0 : i32
    return %c0_i32, %c0_i32_0 : i32, i32
  }
  func.func @transform_11(%arg0: i32) -> (i32, i32) {
    %c0_i32 = arith.constant 0 : i32
    %c0_i32_0 = arith.constant 0 : i32
    %c0_i32_1 = arith.constant 0 : i32
    return %c0_i32, %c0_i32_0 : i32, i32
  }
  func.func @transform_12(%arg0: i32) -> (i32, i32) {
    %c0_i32 = arith.constant 0 : i32
    %c0_i32_0 = arith.constant 0 : i32
    %c0_i32_1 = arith.constant 0 : i32
    return %c0_i32, %c0_i32_0 : i32, i32
  }
  func.func @transform_13(%arg0: i32) -> (i32, i32) {
    %c0_i32 = arith.constant 0 : i32
    %c0_i32_0 = arith.constant 0 : i32
    return %arg0, %c0_i32 : i32, i32
  }
  func.func @transform_14(%arg0: i32) -> (i32, i32) {
    %c0_i32 = arith.constant 0 : i32
    %c0_i32_0 = arith.constant 0 : i32
    return %arg0, %c0_i32 : i32, i32
  }
}

</mosaic_0001>

<llo_original>
// kernel: autoencoder_forward.1
$region0: #{autoencoder_forward.1}
  #allocation0 [shape = 'u32[]', space=smem, size = 0x4, offset = 0x4, fixed_abs, tag = 'smem constant byte address 0x4 - core index']
  #allocation1 [shape = 'u32[144,128]{1,0:T(1,128)}', space=vmem, size = 0x12000, scoped, tag = 'internal scratch']
  %s0 = inlined_call_operand.hbm [shape: f32[512,128], index: 0, kind: input, shape index: {}]
  %s1 = inlined_call_operand.vmem [shape: f32[128,128], index: 1, kind: input, shape index: {}]
  %s2 = inlined_call_operand.vmem [shape: f32[1,128], index: 2, kind: input, shape index: {}]
  %s3 = inlined_call_operand.vmem [shape: f32[128,64], index: 3, kind: input, shape index: {}]
  %s4 = inlined_call_operand.vmem [shape: f32[1,64], index: 4, kind: input, shape index: {}]
  %s5 = inlined_call_operand.vmem [shape: f32[64,32], index: 5, kind: input, shape index: {}]
  %s6 = inlined_call_operand.hbm [shape: f32[1,32], index: 6, kind: input, shape index: {}]
  %s7 = inlined_call_operand.hbm [shape: f32[32,64], index: 7, kind: input, shape index: {}]
  %s8 = inlined_call_operand.hbm [shape: f32[1,64], index: 8, kind: input, shape index: {}]
  %s9 = inlined_call_operand.vmem [shape: f32[64,128], index: 9, kind: input, shape index: {}]
  %s10 = inlined_call_operand.vmem [shape: f32[1,128], index: 10, kind: input, shape index: {}]
  %s11 = inlined_call_operand.vmem [shape: f32[128,128], index: 11, kind: input, shape index: {}]
  %s12 = inlined_call_operand.vmem [shape: f32[1,128], index: 12, kind: input, shape index: {}]
  %s13 = inlined_call_operand.vmem [shape: f32[512,32], index: 13, kind: output, shape index: {0}]
  %s14 = inlined_call_operand.hbm [shape: f32[512,128], index: 14, kind: output, shape index: {1}]
  %15 = xla_tuple %s13, %s14
  %s16 = sld [smem:[#allocation0]]
  $region109: #{autoencoder_forward.1} parent=0
    _
  %s18 = ssub.s32 1, %s16
  %s19 = scalar_select 0, %s18, %s16
  $region1: #{autoencoder_forward.1} parent=0
    #allocation2 [shape = 'u8[131072]{0}', space=vmem, size = 0x20000, scoped, tag = 'input window, operand 0']
    #allocation3 [shape = 's32[2]{0}', space=sflag, size = 0x8, scoped, tag = 'scoped memory for autoencoder_forward.1']
    #allocation4 [shape = 's32[2]{0}', space=sflag, size = 0x8, scoped, tag = 'scoped memory for autoencoder_forward.1']
    #allocation5 [shape = 'u8[512]{0}', space=vmem, size = 0x400, scoped, tag = 'input window, operand 6, single buffered']
    #allocation6 [shape = 's32[1]{0}', space=sflag, size = 0x4, scoped, tag = 'scoped memory for autoencoder_forward.1']
    #allocation7 [shape = 'u8[16384]{0}', space=vmem, size = 0x4000, scoped, tag = 'input window, operand 7, single buffered']
    #allocation8 [shape = 'u8[512]{0}', space=vmem, size = 0x400, scoped, tag = 'input window, operand 8, single buffered']
    #allocation9 [shape = 's32[1]{0}', space=sflag, size = 0x4, scoped, tag = 'scoped memory for autoencoder_forward.1']
    #allocation10 [shape = 'u8[131072]{0}', space=vmem, size = 0x20000, scoped, tag = 'output window, operand 1']
    %20 = vsyncpa [#allocation3], 0
    %s21 = scalar_lea.sflag [#allocation3], 1
    %22 = vsyncpa %s21, 0
    %23 = vsyncpa [#allocation6], 0
    %24 = vsyncpa [#allocation9], 0
    %25 = vsyncpa [#allocation4], 0
    %s26 = scalar_lea.sflag [#allocation4], 1
    %27 = vsyncpa %s26, 0
    loop: start=0, step=1, limit=6
    $region2: #{autoencoder_forward.1} parent=1 // loop_pre_header
      _
    $region3: #{autoencoder_forward.1} parent=1 // loop_header
      %s29 = sphi 0, %s33
      %p30 = scmp.ge.s32.totalorder %s29, 6
      %s39 = sphi 0, %s41
      %s42 = sphi 0, %s39
      %s43 = sphi 0, %s42
      %s59 = sphi 0, %s43
      %s63 = sphi 0, %s63
      %s65 = sphi 0, %s63
      %s66 = sphi 0, %s65
      %s80 = sphi 0, %s66
      %s84 = sphi 0, %s84
      %s86 = sphi 0, %s84
      %s87 = sphi 0, %s86
      %s101 = sphi 0, %s87
      %s105 = sphi 0, %s105
      %s107 = sphi 0, %s105
      %s108 = sphi 0, %s107
      %s122 = sphi 0, %s108
      %s126 = sphi 0, %s126
      %s128 = sphi 0, %s126
      %s129 = sphi 0, %s128
      %s143 = sphi 0, %s129
      %s147 = sphi 0, %s147
      %s149 = sphi 0, %s147
      %s150 = sphi 0, %s149
      %s164 = sphi 0, %s150
      %s168 = sphi 0, %s168
      %s170 = sphi 0, %s168
      %s171 = sphi 0, %s170
      %s185 = sphi 0, %s171
      %s189 = sphi 0, %s189
      %s191 = sphi 0, %s189
      %s192 = sphi 0, %s191
      %s206 = sphi 0, %s192
      %s210 = sphi 0, %s210
      %s212 = sphi 0, %s210
      %s213 = sphi 0, %s212
      %s227 = sphi 0, %s213
      %s231 = sphi 0, %s231
      %s233 = sphi 0, %s231
      %s234 = sphi 0, %s233
      %s248 = sphi 0, %s234
      %s252 = sphi 0, %s252
      %s254 = sphi 0, %s252
      %s255 = sphi 0, %s254
      %s269 = sphi 0, %s255
      %s273 = sphi 0, %s273
      %s275 = sphi 0, %s273
      %s276 = sphi 0, %s275
      %s290 = sphi 0, %s276
      %s294 = sphi 0, %s294
      %s296 = sphi 0, %s294
      %s297 = sphi 0, %s296
      %s311 = sphi 0, %s297
      %s317 = sphi 0, %s319
      %s320 = sphi 0, %s317
      %s321 = sphi 0, %s320
      %s337 = sphi 0, %s321
      %s343 = sphi 0, %s345
      %s346 = sphi 0, %s343
      %s347 = sphi 0, %s346
      %s363 = sphi 0, %s347
    $region4: #{autoencoder_forward.1} parent=1 // loop_header_branch
      %32 = sbr.rel (%p30) target = $region8
    $region5: #{autoencoder_forward.1} parent=1 // loop_body
      %s34 = ssub.s32 %s29, 1
      %s35 = ssub.s32 %s29, 2
      %s36 = sadd.s32 %s29, 1
      %s37 = ssub.s32 %s29, %s36
      %p38 = scmp.eq.s32.totalorder %s37, 0
      %s40 = sadd.s32 %s39, 1
      %s41 = scalar_select %p38, %s39, %s40
      %p44 = pneg %p38
      %p45 = scmp.eq.s32.totalorder %s29, 3
      %p46 = por %p44, %p45
      %p47 = scmp.ne.s32.totalorder %s39, %s42
      %p48 = scmp.eq.s32.totalorder %s29, 0
      %p49 = por %p47, %p48
      %p50 = scmp.ne.s32.totalorder %s39, %s42
      %p51 = scmp.eq.s32.totalorder %s34, 3
      %p52 = por %p50, %p51
      %p53 = scmp.ne.s32.totalorder %s42, %s43
      %p54 = scmp.eq.s32.totalorder %s34, 0
      %p55 = por %p53, %p54
      %p56 = scmp.ne.s32.totalorder %s42, %s43
      %p57 = scmp.eq.s32.totalorder %s35, 3
      %p58 = por %p56, %p57
      %p60 = scmp.ne.s32.totalorder %s43, %s59
      %p61 = scmp.eq.s32.totalorder %s35, 0
      %p62 = por %p60, %p61
      %s64 = sadd.s32 %s63, 1
      %p67 = scmp.eq.s32.totalorder %s29, 3
      %p68 = scmp.ne.s32.totalorder %s63, %s65
      %p69 = scmp.eq.s32.totalorder %s29, 0
      %p70 = por %p68, %p69
      %p71 = scmp.ne.s32.totalorder %s63, %s65
      %p72 = scmp.eq.s32.totalorder %s34, 3
      %p73 = por %p71, %p72
      %p74 = scmp.ne.s32.totalorder %s65, %s66
      %p75 = scmp.eq.s32.totalorder %s34, 0
      %p76 = por %p74, %p75
      %p77 = scmp.ne.s32.totalorder %s65, %s66
      %p78 = scmp.eq.s32.totalorder %s35, 3
      %p79 = por %p77, %p78
      %p81 = scmp.ne.s32.totalorder %s66, %s80
      %p82 = scmp.eq.s32.totalorder %s35, 0
      %p83 = por %p81, %p82
      %s85 = sadd.s32 %s84, 1
      %p88 = scmp.eq.s32.totalorder %s29, 3
      %p89 = scmp.ne.s32.totalorder %s84, %s86
      %p90 = scmp.eq.s32.totalorder %s29, 0
      %p91 = por %p89, %p90
      %p92 = scmp.ne.s32.totalorder %s84, %s86
      %p93 = scmp.eq.s32.totalorder %s34, 3
      %p94 = por %p92, %p93
      %p95 = scmp.ne.s32.totalorder %s86, %s87
      %p96 = scmp.eq.s32.totalorder %s34, 0
      %p97 = por %p95, %p96
      %p98 = scmp.ne.s32.totalorder %s86, %s87
      %p99 = scmp.eq.s32.totalorder %s35, 3
      %p100 = por %p98, %p99
      %p102 = scmp.ne.s32.totalorder %s87, %s101
      %p103 = scmp.eq.s32.totalorder %s35, 0
      %p104 = por %p102, %p103
      %s106 = sadd.s32 %s105, 1
      %p109 = scmp.eq.s32.totalorder %s29, 3
      %p110 = scmp.ne.s32.totalorder %s105, %s107
      %p111 = scmp.eq.s32.totalorder %s29, 0
      %p112 = por %p110, %p111
      %p113 = scmp.ne.s32.totalorder %s105, %s107
      %p114 = scmp.eq.s32.totalorder %s34, 3
      %p115 = por %p113, %p114
      %p116 = scmp.ne.s32.totalorder %s107, %s108
      %p117 = scmp.eq.s32.totalorder %s34, 0
      %p118 = por %p116, %p117
      %p119 = scmp.ne.s32.totalorder %s107, %s108
      %p120 = scmp.eq.s32.totalorder %s35, 3
      %p121 = por %p119, %p120
      %p123 = scmp.ne.s32.totalorder %s108, %s122
      %p124 = scmp.eq.s32.totalorder %s35, 0
      %p125 = por %p123, %p124
      %s127 = sadd.s32 %s126, 1
      %p130 = scmp.eq.s32.totalorder %s29, 3
      %p131 = scmp.ne.s32.totalorder %s126, %s128
      %p132 = scmp.eq.s32.totalorder %s29, 0
      %p133 = por %p131, %p132
      %p134 = scmp.ne.s32.totalorder %s126, %s128
      %p135 = scmp.eq.s32.totalorder %s34, 3
      %p136 = por %p134, %p135
      %p137 = scmp.ne.s32.totalorder %s128, %s129
      %p138 = scmp.eq.s32.totalorder %s34, 0
      %p139 = por %p137, %p138
      %p140 = scmp.ne.s32.totalorder %s128, %s129
      %p141 = scmp.eq.s32.totalorder %s35, 3
      %p142 = por %p140, %p141
      %p144 = scmp.ne.s32.totalorder %s129, %s143
      %p145 = scmp.eq.s32.totalorder %s35, 0
      %p146 = por %p144, %p145
      %s148 = sadd.s32 %s147, 1
      %p151 = scmp.eq.s32.totalorder %s29, 3
      %p152 = scmp.ne.s32.totalorder %s147, %s149
      %p153 = scmp.eq.s32.totalorder %s29, 0
      %p154 = por %p152, %p153
      %p155 = scmp.ne.s32.totalorder %s147, %s149
      %p156 = scmp.eq.s32.totalorder %s34, 3
      %p157 = por %p155, %p156
      %p158 = scmp.ne.s32.totalorder %s149, %s150
      %p159 = scmp.eq.s32.totalorder %s34, 0
      %p160 = por %p158, %p159
      %p161 = scmp.ne.s32.totalorder %s149, %s150
      %p162 = scmp.eq.s32.totalorder %s35, 3
      %p163 = por %p161, %p162
      %p165 = scmp.ne.s32.totalorder %s150, %s164
      %p166 = scmp.eq.s32.totalorder %s35, 0
      %p167 = por %p165, %p166
      %s169 = sadd.s32 %s168, 1
      %p172 = scmp.eq.s32.totalorder %s29, 3
      %p173 = scmp.ne.s32.totalorder %s168, %s170
      %p174 = scmp.eq.s32.totalorder %s29, 0
      %p175 = por %p173, %p174
      %p176 = scmp.ne.s32.totalorder %s168, %s170
      %p177 = scmp.eq.s32.totalorder %s34, 3
      %p178 = por %p176, %p177
      %p179 = scmp.ne.s32.totalorder %s170, %s171
      %p180 = scmp.eq.s32.totalorder %s34, 0
      %p181 = por %p179, %p180
      %p182 = scmp.ne.s32.totalorder %s170, %s171
      %p183 = scmp.eq.s32.totalorder %s35, 3
      %p184 = por %p182, %p183
      %p186 = scmp.ne.s32.totalorder %s171, %s185
      %p187 = scmp.eq.s32.totalorder %s35, 0
      %p188 = por %p186, %p187
      %s190 = sadd.s32 %s189, 1
      %p193 = scmp.eq.s32.totalorder %s29, 3
      %p194 = scmp.ne.s32.totalorder %s189, %s191
      %p195 = scmp.eq.s32.totalorder %s29, 0
      %p196 = por %p194, %p195
      %p197 = scmp.ne.s32.totalorder %s189, %s191
      %p198 = scmp.eq.s32.totalorder %s34, 3
      %p199 = por %p197, %p198
      %p200 = scmp.ne.s32.totalorder %s191, %s192
      %p201 = scmp.eq.s32.totalorder %s34, 0
      %p202 = por %p200, %p201
      %p203 = scmp.ne.s32.totalorder %s191, %s192
      %p204 = scmp.eq.s32.totalorder %s35, 3
      %p205 = por %p203, %p204
      %p207 = scmp.ne.s32.totalorder %s192, %s206
      %p208 = scmp.eq.s32.totalorder %s35, 0
      %p209 = por %p207, %p208
      %s211 = sadd.s32 %s210, 1
      %p214 = scmp.eq.s32.totalorder %s29, 3
      %p215 = scmp.ne.s32.totalorder %s210, %s212
      %p216 = scmp.eq.s32.totalorder %s29, 0
      %p217 = por %p215, %p216
      %p218 = scmp.ne.s32.totalorder %s210, %s212
      %p219 = scmp.eq.s32.totalorder %s34, 3
      %p220 = por %p218, %p219
      %p221 = scmp.ne.s32.totalorder %s212, %s213
      %p222 = scmp.eq.s32.totalorder %s34, 0
      %p223 = por %p221, %p222
      %p224 = scmp.ne.s32.totalorder %s212, %s213
      %p225 = scmp.eq.s32.totalorder %s35, 3
      %p226 = por %p224, %p225
      %p228 = scmp.ne.s32.totalorder %s213, %s227
      %p229 = scmp.eq.s32.totalorder %s35, 0
      %p230 = por %p228, %p229
      %s232 = sadd.s32 %s231, 1
      %p235 = scmp.eq.s32.totalorder %s29, 3
      %p236 = scmp.ne.s32.totalorder %s231, %s233
      %p237 = scmp.eq.s32.totalorder %s29, 0
      %p238 = por %p236, %p237
      %p239 = scmp.ne.s32.totalorder %s231, %s233
      %p240 = scmp.eq.s32.totalorder %s34, 3
      %p241 = por %p239, %p240
      %p242 = scmp.ne.s32.totalorder %s233, %s234
      %p243 = scmp.eq.s32.totalorder %s34, 0
      %p244 = por %p242, %p243
      %p245 = scmp.ne.s32.totalorder %s233, %s234
      %p246 = scmp.eq.s32.totalorder %s35, 3
      %p247 = por %p245, %p246
      %p249 = scmp.ne.s32.totalorder %s234, %s248
      %p250 = scmp.eq.s32.totalorder %s35, 0
      %p251 = por %p249, %p250
      %s253 = sadd.s32 %s252, 1
      %p256 = scmp.eq.s32.totalorder %s29, 3
      %p257 = scmp.ne.s32.totalorder %s252, %s254
      %p258 = scmp.eq.s32.totalorder %s29, 0
      %p259 = por %p257, %p258
      %p260 = scmp.ne.s32.totalorder %s252, %s254
      %p261 = scmp.eq.s32.totalorder %s34, 3
      %p262 = por %p260, %p261
      %p263 = scmp.ne.s32.totalorder %s254, %s255
      %p264 = scmp.eq.s32.totalorder %s34, 0
      %p265 = por %p263, %p264
      %p266 = scmp.ne.s32.totalorder %s254, %s255
      %p267 = scmp.eq.s32.totalorder %s35, 3
      %p268 = por %p266, %p267
      %p270 = scmp.ne.s32.totalorder %s255, %s269
      %p271 = scmp.eq.s32.totalorder %s35, 0
      %p272 = por %p270, %p271
      %s274 = sadd.s32 %s273, 1
      %p277 = scmp.eq.s32.totalorder %s29, 3
      %p278 = scmp.ne.s32.totalorder %s273, %s275
      %p279 = scmp.eq.s32.totalorder %s29, 0
      %p280 = por %p278, %p279
      %p281 = scmp.ne.s32.totalorder %s273, %s275
      %p282 = scmp.eq.s32.totalorder %s34, 3
      %p283 = por %p281, %p282
      %p284 = scmp.ne.s32.totalorder %s275, %s276
      %p285 = scmp.eq.s32.totalorder %s34, 0
      %p286 = por %p284, %p285
      %p287 = scmp.ne.s32.totalorder %s275, %s276
      %p288 = scmp.eq.s32.totalorder %s35, 3
      %p289 = por %p287, %p288
      %p291 = scmp.ne.s32.totalorder %s276, %s290
      %p292 = scmp.eq.s32.totalorder %s35, 0
      %p293 = por %p291, %p292
      %s295 = sadd.s32 %s294, 1
      %p298 = scmp.eq.s32.totalorder %s29, 3
      %p299 = scmp.ne.s32.totalorder %s294, %s296
      %p300 = scmp.eq.s32.totalorder %s29, 0
      %p301 = por %p299, %p300
      %p302 = scmp.ne.s32.totalorder %s294, %s296
      %p303 = scmp.eq.s32.totalorder %s34, 3
      %p304 = por %p302, %p303
      %p305 = scmp.ne.s32.totalorder %s296, %s297
      %p306 = scmp.eq.s32.totalorder %s34, 0
      %p307 = por %p305, %p306
      %p308 = scmp.ne.s32.totalorder %s296, %s297
      %p309 = scmp.eq.s32.totalorder %s35, 3
      %p310 = por %p308, %p309
      %p312 = scmp.ne.s32.totalorder %s297, %s311
      %p313 = scmp.eq.s32.totalorder %s35, 0
      %p314 = por %p312, %p313
      %s315 = ssub.s32 %s29, %s36
      %p316 = scmp.eq.s32.totalorder %s315, 0
      %s318 = sadd.s32 %s317, 1
      %s319 = scalar_select %p316, %s317, %s318
      %p322 = pneg %p316
      %p323 = scmp.eq.s32.totalorder %s29, 3
      %p324 = por %p322, %p323
      %p325 = scmp.ne.s32.totalorder %s317, %s320
      %p326 = scmp.eq.s32.totalorder %s29, 0
      %p327 = por %p325, %p326
      %p328 = scmp.ne.s32.totalorder %s317, %s320
      %p329 = scmp.eq.s32.totalorder %s34, 3
      %p330 = por %p328, %p329
      %p331 = scmp.ne.s32.totalorder %s320, %s321
      %p332 = scmp.eq.s32.totalorder %s34, 0
      %p333 = por %p331, %p332
      %p334 = scmp.ne.s32.totalorder %s320, %s321
      %p335 = scmp.eq.s32.totalorder %s35, 3
      %p336 = por %p334, %p335
      %p338 = scmp.ne.s32.totalorder %s321, %s337
      %p339 = scmp.eq.s32.totalorder %s35, 0
      %p340 = por %p338, %p339
      %s341 = ssub.s32 %s29, %s36
      %p342 = scmp.eq.s32.totalorder %s341, 0
      %s344 = sadd.s32 %s343, 1
      %s345 = scalar_select %p342, %s343, %s344
      %p348 = pneg %p342
      %p349 = scmp.eq.s32.totalorder %s29, 3
      %p350 = por %p348, %p349
      %p351 = scmp.ne.s32.totalorder %s343, %s346
      %p352 = scmp.eq.s32.totalorder %s29, 0
      %p353 = por %p351, %p352
      %p354 = scmp.ne.s32.totalorder %s343, %s346
      %p355 = scmp.eq.s32.totalorder %s34, 3
      %p356 = por %p354, %p355
      %p357 = scmp.ne.s32.totalorder %s346, %s347
      %p358 = scmp.eq.s32.totalorder %s34, 0
      %p359 = por %p357, %p358
      %p360 = scmp.ne.s32.totalorder %s346, %s347
      %p361 = scmp.eq.s32.totalorder %s35, 3
      %p362 = por %p360, %p361
      %p364 = scmp.ne.s32.totalorder %s347, %s363
      %p365 = scmp.eq.s32.totalorder %s35, 0
      %p366 = por %p364, %p365
      %p367 = scmp.le.s32.totalorder 1, %s29
      %p368 = scmp.lt.s32.totalorder %s29, 5
      %p369 = pnand %p367, %p368
      %p370 = pneg %p369
      // Predicated region
      $region9: #{autoencoder_forward.1} parent=5 // pred_check
        _
      $region10: #{autoencoder_forward.1} parent=5 // pred_check_branch
        %372 = sbr.rel (%p369) target = $region12
      $region11: #{autoencoder_forward.1} parent=5 // pred_region
        %s373 = ssub.s32 %s29, 1
        // Predicated region
        $region13: #{autoencoder_forward.1} parent=11 // pred_check
          %p374 = pneg %p76
        $region14: #{autoencoder_forward.1} parent=11 // pred_check_branch
          %376 = sbr.rel (%p374) target = $region16
        $region15: #{autoencoder_forward.1} parent=11 // pred_region
          _
        $region16: #{autoencoder_forward.1} parent=11 // pred_fallthru
          _
        // Predicated region
        $region17: #{autoencoder_forward.1} parent=11 // pred_check
          %p377 = pneg %p97
        $region18: #{autoencoder_forward.1} parent=11 // pred_check_branch
          %379 = sbr.rel (%p377) target = $region20
        $region19: #{autoencoder_forward.1} parent=11 // pred_region
          _
        $region20: #{autoencoder_forward.1} parent=11 // pred_fallthru
          _
        // Predicated region
        $region21: #{autoencoder_forward.1} parent=11 // pred_check
          %p380 = pneg %p118
        $region22: #{autoencoder_forward.1} parent=11 // pred_check_branch
          %382 = sbr.rel (%p380) target = $region24
        $region23: #{autoencoder_forward.1} parent=11 // pred_region
          _
        $region24: #{autoencoder_forward.1} parent=11 // pred_fallthru
          _
        // Predicated region
        $region25: #{autoencoder_forward.1} parent=11 // pred_check
          %p383 = pneg %p139
        $region26: #{autoencoder_forward.1} parent=11 // pred_check_branch
          %385 = sbr.rel (%p383) target = $region28
        $region27: #{autoencoder_forward.1} parent=11 // pred_region
          _
        $region28: #{autoencoder_forward.1} parent=11 // pred_fallthru
          _
        // Predicated region
        $region29: #{autoencoder_forward.1} parent=11 // pred_check
          %p386 = pneg %p160
        $region30: #{autoencoder_forward.1} parent=11 // pred_check_branch
          %388 = sbr.rel (%p386) target = $region32
        $region31: #{autoencoder_forward.1} parent=11 // pred_region
          _
        $region32: #{autoencoder_forward.1} parent=11 // pred_fallthru
          _
        // Predicated region
        $region33: #{autoencoder_forward.1} parent=11 // pred_check
          %p389 = pneg %p181
        $region34: #{autoencoder_forward.1} parent=11 // pred_check_branch
          %391 = sbr.rel (%p389) target = $region36
        $region35: #{autoencoder_forward.1} parent=11 // pred_region
          %s393 = ssub.s32 16, 16
          %394 = vsyncadd [#allocation6], %s393
          %s396 = sshll.u32 [#allocation5], 4
          %s397 = int_to_ptr.vmem [resolvable:$true] %s396
          %399 = dma.hbm_to_vmem [thread:$0]  %s6, 16, %s397, [#allocation6]
        $region36: #{autoencoder_forward.1} parent=11 // pred_fallthru
          _
        // Predicated region
        $region37: #{autoencoder_forward.1} parent=11 // pred_check
          %p400 = pneg %p202
        $region38: #{autoencoder_forward.1} parent=11 // pred_check_branch
          %402 = sbr.rel (%p400) target = $region40
        $region39: #{autoencoder_forward.1} parent=11 // pred_region
          %s404 = ssub.s32 512, 512
          %405 = vsyncadd [#allocation6], %s404
          %s406 = sshll.u32 [#allocation7], 4
          %s407 = int_to_ptr.vmem [resolvable:$true] %s406
          %412 = dma.hbm_to_vmem [thread:$0]  %s7, 512, %s407, [#allocation6], 128, 128, 8
        $region40: #{autoencoder_forward.1} parent=11 // pred_fallthru
          _
        // Predicated region
        $region41: #{autoencoder_forward.1} parent=11 // pred_check
          %p413 = pneg %p223
        $region42: #{autoencoder_forward.1} parent=11 // pred_check_branch
          %415 = sbr.rel (%p413) target = $region44
        $region43: #{autoencoder_forward.1} parent=11 // pred_region
          %s417 = ssub.s32 16, 16
          %418 = vsyncadd [#allocation9], %s417
          %s420 = sshll.u32 [#allocation8], 4
          %s421 = int_to_ptr.vmem [resolvable:$true] %s420
          %423 = dma.hbm_to_vmem [thread:$0]  %s8, 16, %s421, [#allocation9]
        $region44: #{autoencoder_forward.1} parent=11 // pred_fallthru
          _
        // Predicated region
        $region45: #{autoencoder_forward.1} parent=11 // pred_check
          %p424 = pneg %p244
        $region46: #{autoencoder_forward.1} parent=11 // pred_check_branch
          %426 = sbr.rel (%p424) target = $region48
        $region47: #{autoencoder_forward.1} parent=11 // pred_region
          _
        $region48: #{autoencoder_forward.1} parent=11 // pred_fallthru
          _
        // Predicated region
        $region49: #{autoencoder_forward.1} parent=11 // pred_check
          %p427 = pneg %p265
        $region50: #{autoencoder_forward.1} parent=11 // pred_check_branch
          %429 = sbr.rel (%p427) target = $region52
        $region51: #{autoencoder_forward.1} parent=11 // pred_region
          _
        $region52: #{autoencoder_forward.1} parent=11 // pred_fallthru
          _
        // Predicated region
        $region53: #{autoencoder_forward.1} parent=11 // pred_check
          %p430 = pneg %p286
        $region54: #{autoencoder_forward.1} parent=11 // pred_check_branch
          %432 = sbr.rel (%p430) target = $region56
        $region55: #{autoencoder_forward.1} parent=11 // pred_region
          _
        $region56: #{autoencoder_forward.1} parent=11 // pred_fallthru
          _
        // Predicated region
        $region57: #{autoencoder_forward.1} parent=11 // pred_check
          %p433 = pneg %p307
        $region58: #{autoencoder_forward.1} parent=11 // pred_check_branch
          %435 = sbr.rel (%p433) target = $region60
        $region59: #{autoencoder_forward.1} parent=11 // pred_region
          _
        $region60: #{autoencoder_forward.1} parent=11 // pred_fallthru
          _
      $region12: #{autoencoder_forward.1} parent=5 // pred_fallthru
        _
      %p436 = scmp.lt.s32.totalorder %s29, 4
      // Predicated region
      $region61: #{autoencoder_forward.1} parent=5 // pred_check
        %p437 = pneg %p436
      $region62: #{autoencoder_forward.1} parent=5 // pred_check_branch
        %439 = sbr.rel (%p437) target = $region64
      $region63: #{autoencoder_forward.1} parent=5 // pred_region
        // Predicated region
        $region65: #{autoencoder_forward.1} parent=63 // pred_check
          %p440 = pneg %p49
        $region66: #{autoencoder_forward.1} parent=63 // pred_check_branch
          %442 = sbr.rel (%p440) target = $region68
        $region67: #{autoencoder_forward.1} parent=63 // pred_region
          %s443 = sand.u32 %s39, 1
          %s444 = scalar_lea.sflag [#allocation3], %s443
          %s445 = sand.u32 %s39, 1
          %s446 = smul.addr %s445, 128
          %s447 = scalar_lea.vmem [#allocation2], %s446
          %s448 = smul.u32 16, %s29
          %s450 = ssub.s32 2048, 2048
          %451 = vsyncadd %s444, %s450
          %s452 = smul.addr %s448, 128
          %s453 = scalar_lea.hbm %s0, %s452
          %s454 = sshll.u32 %s447, 4
          %s455 = int_to_ptr.vmem [resolvable:$true] %s454
          %460 = dma.hbm_to_vmem [thread:$0]  %s453, 2048, %s455, %s444, 128, 128, 8
        $region68: #{autoencoder_forward.1} parent=63 // pred_fallthru
          _
      $region64: #{autoencoder_forward.1} parent=5 // pred_fallthru
        _
      %p461 = scmp.le.s32.totalorder 1, %s29
      %p462 = scmp.lt.s32.totalorder %s29, 5
      %p463 = pnand %p461, %p462
      %p464 = pneg %p463
      // Predicated region
      $region69: #{autoencoder_forward.1} parent=5 // pred_check
        _
      $region70: #{autoencoder_forward.1} parent=5 // pred_check_branch
        %466 = sbr.rel (%p463) target = $region72
      $region71: #{autoencoder_forward.1} parent=5 // pred_region
        %s467 = ssub.s32 %s29, 1
        %s468 = sand.u32 %s42, 1
        %s469 = scalar_lea.sflag [#allocation3], %s468
        %s470 = sand.u32 %s42, 1
        %s471 = smul.addr %s470, 128
        %s472 = scalar_lea.vmem [#allocation2], %s471
        // Predicated region
        $region73: #{autoencoder_forward.1} parent=71 // pred_check
          %p473 = pneg %p55
        $region74: #{autoencoder_forward.1} parent=71 // pred_check_branch
          %475 = sbr.rel (%p473) target = $region76
        $region75: #{autoencoder_forward.1} parent=71 // pred_region
          %476 = dma.done %s469, 2048
        $region76: #{autoencoder_forward.1} parent=71 // pred_fallthru
          _
        // Predicated region
        $region77: #{autoencoder_forward.1} parent=71 // pred_check
          %p477 = pneg %p181
        $region78: #{autoencoder_forward.1} parent=71 // pred_check_branch
          %479 = sbr.rel (%p477) target = $region80
        $region79: #{autoencoder_forward.1} parent=71 // pred_region
          %480 = dma.done [#allocation6], 16
        $region80: #{autoencoder_forward.1} parent=71 // pred_fallthru
          _
        // Predicated region
        $region81: #{autoencoder_forward.1} parent=71 // pred_check
          %p481 = pneg %p202
        $region82: #{autoencoder_forward.1} parent=71 // pred_check_branch
          %483 = sbr.rel (%p481) target = $region84
        $region83: #{autoencoder_forward.1} parent=71 // pred_region
          %484 = dma.done [#allocation6], 512
        $region84: #{autoencoder_forward.1} parent=71 // pred_fallthru
          _
        // Predicated region
        $region85: #{autoencoder_forward.1} parent=71 // pred_check
          %p485 = pneg %p223
        $region86: #{autoencoder_forward.1} parent=71 // pred_check_branch
          %487 = sbr.rel (%p485) target = $region88
        $region87: #{autoencoder_forward.1} parent=71 // pred_region
          %488 = dma.done [#allocation9], 16
        $region88: #{autoencoder_forward.1} parent=71 // pred_fallthru
          _
        %s489 = sand.u32 %s42, 1
        %s490 = scalar_lea.sflag [#allocation3], %s489
        %s491 = sand.u32 %s42, 1
        %s492 = smul.addr %s491, 128
        %s493 = scalar_lea.vmem [#allocation2], %s492
        %p494 = pneg %p55
        %p495 = pneg %p52
        %p496 = pneg %p76
        %p497 = pneg %p73
        %p498 = pneg %p97
        %p499 = pneg %p94
        %p500 = pneg %p118
        %p501 = pneg %p115
        %p502 = pneg %p139
        %p503 = pneg %p136
        %p504 = pneg %p160
        %p505 = pneg %p157
        %p506 = pneg %p181
        %p507 = pneg %p178
        %p508 = pneg %p202
        %p509 = pneg %p199
        %p510 = pneg %p223
        %p511 = pneg %p220
        %p512 = pneg %p244
        %p513 = pneg %p241
        %p514 = pneg %p265
        %p515 = pneg %p262
        %p516 = pneg %p286
        %p517 = pneg %p283
        %p518 = pneg %p307
        %p519 = pneg %p304
        %p520 = pneg %p333
        %p521 = pneg %p330
        %s522 = smul.u32 16, %s34
        %p523 = scmp.lt.s32.totalorder %s522, 63
        %s524 = scalar_select %p523, %s522, 63
        %s525 = smul.addr %s524, 8
        %s526 = scalar_lea.vmem %s13, %s525
        %p527 = pneg %p359
        %p528 = pneg %p356
        %s529 = sand.u32 %s346, 1
        %s530 = scalar_lea.sflag [#allocation4], %s529
        %s531 = sand.u32 %s346, 1
        %s532 = smul.addr %s531, 128
        %s533 = scalar_lea.vmem [#allocation10], %s532
        %s534 = smul.u32 16, %s34
        %s535 = smul.u32 16, %s34
        %p536 = scmp.lt.s32.totalorder %s535, 63
        %s537 = scalar_select %p536, %s535, 63
        %s538 = smul.addr %s537, 8
        %s539 = scalar_lea.vmem %s13, %s538
        %s540 = smul.u32 16, %s34
        %s541 = smul.u32 16, %s34
        %v542 = vld [vmem:[%s472] sm:$0xff]
        %v543 = vld [vmem:[%s472 + $0x8] sm:$0xff]
        %v544 = vld [vmem:[%s472 + $0x10] sm:$0xff]
        %v545 = vld [vmem:[%s472 + $0x18] sm:$0xff]
        %v546 = vld [vmem:[%s472 + $0x20] sm:$0xff]
        %v547 = vld [vmem:[%s472 + $0x28] sm:$0xff]
        %v548 = vld [vmem:[%s472 + $0x30] sm:$0xff]
        %v549 = vld [vmem:[%s472 + $0x38] sm:$0xff]
        %v550 = vld [vmem:[%s472 + $0x40] sm:$0xff]
        %v551 = vld [vmem:[%s472 + $0x48] sm:$0xff]
        %v552 = vld [vmem:[%s472 + $0x50] sm:$0xff]
        %v553 = vld [vmem:[%s472 + $0x58] sm:$0xff]
        %v554 = vld [vmem:[%s472 + $0x60] sm:$0xff]
        %v555 = vld [vmem:[%s472 + $0x68] sm:$0xff]
        %v556 = vld [vmem:[%s472 + $0x70] sm:$0xff]
        %v557 = vld [vmem:[%s472 + $0x78] sm:$0xff]
        %v558 = vld [vmem:[%s1] sm:$0xff]
        %v559 = vld [vmem:[%s1 + $0x8] sm:$0xff]
        %v560 = vld [vmem:[%s1 + $0x10] sm:$0xff]
        %v561 = vld [vmem:[%s1 + $0x18] sm:$0xff]
        %v562 = vld [vmem:[%s1 + $0x20] sm:$0xff]
        %v563 = vld [vmem:[%s1 + $0x28] sm:$0xff]
        %v564 = vld [vmem:[%s1 + $0x30] sm:$0xff]
        %v565 = vld [vmem:[%s1 + $0x38] sm:$0xff]
        %v566 = vld [vmem:[%s1 + $0x40] sm:$0xff]
        %v567 = vld [vmem:[%s1 + $0x48] sm:$0xff]
        %v568 = vld [vmem:[%s1 + $0x50] sm:$0xff]
        %v569 = vld [vmem:[%s1 + $0x58] sm:$0xff]
        %v570 = vld [vmem:[%s1 + $0x60] sm:$0xff]
        %v571 = vld [vmem:[%s1 + $0x68] sm:$0xff]
        %v572 = vld [vmem:[%s1 + $0x70] sm:$0xff]
        %v573 = vld [vmem:[%s1 + $0x78] sm:$0xff]
        %v574 = vld [vmem:[%s2] sm:$0x1]
        %v576 = vlaneseq
        %v577 = vshrl.u32 %v576, 7
        %v578 = vsub.s32 0, %v577
        %v579 = vrot.slane %v574, %v578
        %581 = vmatprep.subr.mxu0 0.0
        %582 = vmatpush1.msra.mxu0 %v558
        %583 = vmatprep.subr.mxu0 0.0
        %584 = vmatpush1.msra.mxu0 %v559
        %585 = vmatprep.subr.mxu0 0.0
        %586 = vmatpush1.msra.mxu0 %v560
        %587 = vmatprep.subr.mxu0 0.0
        %588 = vmatpush1.msra.mxu0 %v561
        %589 = vmatprep.subr.mxu0 0.0
        %590 = vmatpush1.msra.mxu0 %v562
        %591 = vmatprep.subr.mxu0 0.0
        %592 = vmatpush1.msra.mxu0 %v563
        %593 = vmatprep.subr.mxu0 0.0
        %594 = vmatpush1.msra.mxu0 %v564
        %595 = vmatprep.subr.mxu0 0.0
        %596 = vmatpush1.msra.mxu0 %v565
        %597 = vmatprep.subr.mxu0 0.0
        %598 = vmatpush1.msra.mxu0 %v566
        %599 = vmatprep.subr.mxu0 0.0
        %600 = vmatpush1.msra.mxu0 %v567
        %601 = vmatprep.subr.mxu0 0.0
        %602 = vmatpush1.msra.mxu0 %v568
        %603 = vmatprep.subr.mxu0 0.0
        %604 = vmatpush1.msra.mxu0 %v569
        %605 = vmatprep.subr.mxu0 0.0
        %606 = vmatpush1.msra.mxu0 %v570
        %607 = vmatprep.subr.mxu0 0.0
        %608 = vmatpush1.msra.mxu0 %v571
        %609 = vmatprep.subr.mxu0 0.0
        %610 = vmatpush1.msra.mxu0 %v572
        %611 = vmatprep.subr.mxu0 0.0
        %612 = vmatpush1.msra.mxu0 %v573
        %613 = vmatprep.subr.mxu0 0.0
        %614 = vmatpush1.msra.mxu0 0.0
        %615 = vmatprep.subr.mxu0 0.0
        %616 = vmatpush1.msra.mxu0 0.0
        %617 = vmatprep.subr.mxu0 0.0
        %618 = vmatpush1.msra.mxu0 0.0
        %619 = vmatprep.subr.mxu0 0.0
        %620 = vmatpush1.msra.mxu0 0.0
        %621 = vmatprep.subr.mxu0 0.0
        %622 = vmatpush1.msra.mxu0 0.0
        %623 = vmatprep.subr.mxu0 0.0
        %624 = vmatpush1.msra.mxu0 0.0
        %625 = vmatprep.subr.mxu0 0.0
        %626 = vmatpush1.msra.mxu0 0.0
        %627 = vmatprep.subr.mxu0 0.0
        %628 = vmatpush1.msra.mxu0 0.0
        %629 = vmatprep.subr.mxu0 0.0
        %630 = vmatpush1.msra.mxu0 0.0
        %631 = vmatprep.subr.mxu0 0.0
        %632 = vmatpush1.msra.mxu0 0.0
        %633 = vmatprep.subr.mxu0 0.0
        %634 = vmatpush1.msra.mxu0 0.0
        %635 = vmatprep.subr.mxu0 0.0
        %636 = vmatpush1.msra.mxu0 0.0
        %637 = vmatprep.subr.mxu0 0.0
        %638 = vmatpush1.msra.mxu0 0.0
        %639 = vmatprep.subr.mxu0 0.0
        %640 = vmatpush1.msra.mxu0 0.0
        %641 = vmatprep.subr.mxu0 0.0
        %642 = vmatpush1.msra.mxu0 0.0
        %643 = vmatprep.subr.mxu0 0.0
        %644 = vmatpush1.msra.mxu0 0.0
        %645 = vmatprep.mubr.f32.mxu0 0.0
        %646 = vmatmul.mubr.f32.gmra.mrb[0].mxu0 %v542
        %v647 = vpop.f32.mrb[0].mxu0
        %v648 = vadd.f32 %v579, %v647
        %v649 = vpop.f32.mrb[0].mxu0
        %650 = vmatprep.mubr.f32.mxu0 0.0
        %651 = vmatmul.mubr.f32.gmra.mrb[0].mxu0 %v543
        %v652 = vpop.f32.mrb[0].mxu0
        %v653 = vadd.f32 %v579, %v652
        %v654 = vpop.f32.mrb[0].mxu0
        %655 = vmatprep.mubr.f32.mxu0 0.0
        %656 = vmatmul.mubr.f32.gmra.mrb[0].mxu0 %v544
        %v657 = vpop.f32.mrb[0].mxu0
        %v658 = vadd.f32 %v579, %v657
        %v659 = vpop.f32.mrb[0].mxu0
        %660 = vmatprep.mubr.f32.mxu0 0.0
        %661 = vmatmul.mubr.f32.gmra.mrb[0].mxu0 %v545
        %v662 = vpop.f32.mrb[0].mxu0
        %v663 = vadd.f32 %v579, %v662
        %v664 = vpop.f32.mrb[0].mxu0
        %665 = vmatprep.mubr.f32.mxu0 0.0
        %666 = vmatmul.mubr.f32.gmra.mrb[0].mxu0 %v546
        %v667 = vpop.f32.mrb[0].mxu0
        %v668 = vadd.f32 %v579, %v667
        %v669 = vpop.f32.mrb[0].mxu0
        %670 = vmatprep.mubr.f32.mxu0 0.0
        %671 = vmatmul.mubr.f32.gmra.mrb[0].mxu0 %v547
        %v672 = vpop.f32.mrb[0].mxu0
        %v673 = vadd.f32 %v579, %v672
        %v674 = vpop.f32.mrb[0].mxu0
        %675 = vmatprep.mubr.f32.mxu0 0.0
        %676 = vmatmul.mubr.f32.gmra.mrb[0].mxu0 %v548
        %v677 = vpop.f32.mrb[0].mxu0
        %v678 = vadd.f32 %v579, %v677
        %v679 = vpop.f32.mrb[0].mxu0
        %680 = vmatprep.mubr.f32.mxu0 0.0
        %681 = vmatmul.mubr.f32.gmra.mrb[0].mxu0 %v549
        %v682 = vpop.f32.mrb[0].mxu0
        %v683 = vadd.f32 %v579, %v682
        %v684 = vpop.f32.mrb[0].mxu0
        %685 = vmatprep.mubr.f32.mxu0 0.0
        %686 = vmatmul.mubr.f32.gmra.mrb[0].mxu0 %v550
        %v687 = vpop.f32.mrb[0].mxu0
        %v688 = vadd.f32 %v579, %v687
        %v689 = vpop.f32.mrb[0].mxu0
        %690 = vmatprep.mubr.f32.mxu0 0.0
        %691 = vmatmul.mubr.f32.gmra.mrb[0].mxu0 %v551
        %v692 = vpop.f32.mrb[0].mxu0
        %v693 = vadd.f32 %v579, %v692
        %v694 = vpop.f32.mrb[0].mxu0
        %695 = vmatprep.mubr.f32.mxu0 0.0
        %696 = vmatmul.mubr.f32.gmra.mrb[0].mxu0 %v552
        %v697 = vpop.f32.mrb[0].mxu0
        %v698 = vadd.f32 %v579, %v697
        %v699 = vpop.f32.mrb[0].mxu0
        %700 = vmatprep.mubr.f32.mxu0 0.0
        %701 = vmatmul.mubr.f32.gmra.mrb[0].mxu0 %v553
        %v702 = vpop.f32.mrb[0].mxu0
        %v703 = vadd.f32 %v579, %v702
        %v704 = vpop.f32.mrb[0].mxu0
        %705 = vmatprep.mubr.f32.mxu0 0.0
        %706 = vmatmul.mubr.f32.gmra.mrb[0].mxu0 %v554
        %v707 = vpop.f32.mrb[0].mxu0
        %v708 = vadd.f32 %v579, %v707
        %v709 = vpop.f32.mrb[0].mxu0
        %710 = vmatprep.mubr.f32.mxu0 0.0
        %711 = vmatmul.mubr.f32.gmra.mrb[0].mxu0 %v555
        %v712 = vpop.f32.mrb[0].mxu0
        %v713 = vadd.f32 %v579, %v712
        %v714 = vpop.f32.mrb[0].mxu0
        %715 = vmatprep.mubr.f32.mxu0 0.0
        %716 = vmatmul.mubr.f32.gmra.mrb[0].mxu0 %v556
        %v717 = vpop.f32.mrb[0].mxu0
        %v718 = vadd.f32 %v579, %v717
        %v719 = vpop.f32.mrb[0].mxu0
        %720 = vmatprep.mubr.f32.mxu0 0.0
        %721 = vmatmul.mubr.f32.gmra.mrb[0].mxu0 %v557
        %v722 = vpop.f32.mrb[0].mxu0
        %v723 = vadd.f32 %v579, %v722
        %v724 = vpop.f32.mrb[0].mxu0
        %725 = vdwg.mxu0
        %v726 = vmax.f32 %v648, 0.0
        %v727 = vmax.f32 %v653, 0.0
        %v728 = vmax.f32 %v658, 0.0
        %v729 = vmax.f32 %v663, 0.0
        %v730 = vmax.f32 %v668, 0.0
        %v731 = vmax.f32 %v673, 0.0
        %v732 = vmax.f32 %v678, 0.0
        %v733 = vmax.f32 %v683, 0.0
        %v734 = vmax.f32 %v688, 0.0
        %v735 = vmax.f32 %v693, 0.0
        %v736 = vmax.f32 %v698, 0.0
        %v737 = vmax.f32 %v703, 0.0
        %v738 = vmax.f32 %v708, 0.0
        %v739 = vmax.f32 %v713, 0.0
        %v740 = vmax.f32 %v718, 0.0
        %v741 = vmax.f32 %v723, 0.0
        %v742 = vld [vmem:[%s3] sm:$0xff]
        %v743 = vld [vmem:[%s3 + $0x8] sm:$0xff]
        %v744 = vld [vmem:[%s3 + $0x10] sm:$0xff]
        %v745 = vld [vmem:[%s3 + $0x18] sm:$0xff]
        %v746 = vld [vmem:[%s3 + $0x20] sm:$0xff]
        %v747 = vld [vmem:[%s3 + $0x28] sm:$0xff]
        %v748 = vld [vmem:[%s3 + $0x30] sm:$0xff]
        %v749 = vld [vmem:[%s3 + $0x38] sm:$0xff]
        %v750 = vld [vmem:[%s3 + $0x40] sm:$0xff]
        %v751 = vld [vmem:[%s3 + $0x48] sm:$0xff]
        %v752 = vld [vmem:[%s3 + $0x50] sm:$0xff]
        %v753 = vld [vmem:[%s3 + $0x58] sm:$0xff]
        %v754 = vld [vmem:[%s3 + $0x60] sm:$0xff]
        %v755 = vld [vmem:[%s3 + $0x68] sm:$0xff]
        %v756 = vld [vmem:[%s3 + $0x70] sm:$0xff]
        %v757 = vld [vmem:[%s3 + $0x78] sm:$0xff]
        %v758 = vld [vmem:[%s4] sm:$0x1]
        %v760 = vlaneseq
        %v761 = vshrl.u32 %v760, 7
        %v762 = vsub.s32 0, %v761
        %v763 = vrot.slane %v758, %v762
        %765 = vmatprep.subr.mxu0 0.0
        %766 = vmatpush1.msra.mxu0 %v742
        %767 = vmatprep.subr.mxu0 0.0
        %768 = vmatpush1.msra.mxu0 %v743
        %769 = vmatprep.subr.mxu0 0.0
        %770 = vmatpush1.msra.mxu0 %v744
        %771 = vmatprep.subr.mxu0 0.0
        %772 = vmatpush1.msra.mxu0 %v745
        %773 = vmatprep.subr.mxu0 0.0
        %774 = vmatpush1.msra.mxu0 %v746
        %775 = vmatprep.subr.mxu0 0.0
        %776 = vmatpush1.msra.mxu0 %v747
        %777 = vmatprep.subr.mxu0 0.0
        %778 = vmatpush1.msra.mxu0 %v748
        %779 = vmatprep.subr.mxu0 0.0
        %780 = vmatpush1.msra.mxu0 %v749
        %781 = vmatprep.subr.mxu0 0.0
        %782 = vmatpush1.msra.mxu0 %v750
        %783 = vmatprep.subr.mxu0 0.0
        %784 = vmatpush1.msra.mxu0 %v751
        %785 = vmatprep.subr.mxu0 0.0
        %786 = vmatpush1.msra.mxu0 %v752
        %787 = vmatprep.subr.mxu0 0.0
        %788 = vmatpush1.msra.mxu0 %v753
        %789 = vmatprep.subr.mxu0 0.0
        %790 = vmatpush1.msra.mxu0 %v754
        %791 = vmatprep.subr.mxu0 0.0
        %792 = vmatpush1.msra.mxu0 %v755
        %793 = vmatprep.subr.mxu0 0.0
        %794 = vmatpush1.msra.mxu0 %v756
        %795 = vmatprep.subr.mxu0 0.0
        %796 = vmatpush1.msra.mxu0 %v757
        %797 = vmatprep.subr.mxu0 0.0
        %798 = vmatpush1.msra.mxu0 0.0
        %799 = vmatprep.subr.mxu0 0.0
        %800 = vmatpush1.msra.mxu0 0.0
        %801 = vmatprep.subr.mxu0 0.0
        %802 = vmatpush1.msra.mxu0 0.0
        %803 = vmatprep.subr.mxu0 0.0
        %804 = vmatpush1.msra.mxu0 0.0
        %805 = vmatprep.subr.mxu0 0.0
        %806 = vmatpush1.msra.mxu0 0.0
        %807 = vmatprep.subr.mxu0 0.0
        %808 = vmatpush1.msra.mxu0 0.0
        %809 = vmatprep.subr.mxu0 0.0
        %810 = vmatpush1.msra.mxu0 0.0
        %811 = vmatprep.subr.mxu0 0.0
        %812 = vmatpush1.msra.mxu0 0.0
        %813 = vmatprep.subr.mxu0 0.0
        %814 = vmatpush1.msra.mxu0 0.0
        %815 = vmatprep.subr.mxu0 0.0
        %816 = vmatpush1.msra.mxu0 0.0
        %817 = vmatprep.subr.mxu0 0.0
        %818 = vmatpush1.msra.mxu0 0.0
        %819 = vmatprep.subr.mxu0 0.0
        %820 = vmatpush1.msra.mxu0 0.0
        %821 = vmatprep.subr.mxu0 0.0
        %822 = vmatpush1.msra.mxu0 0.0
        %823 = vmatprep.subr.mxu0 0.0
        %824 = vmatpush1.msra.mxu0 0.0
        %825 = vmatprep.subr.mxu0 0.0
        %826 = vmatpush1.msra.mxu0 0.0
        %827 = vmatprep.subr.mxu0 0.0
        %828 = vmatpush1.msra.mxu0 0.0
        %829 = vmatprep.mubr.f32.mxu0 0.0
        %830 = vmatmul.mubr.f32.gmra.mrb[0].mxu0 %v726
        %v831 = vpop.f32.mrb[0].mxu0
        %v832 = vadd.f32 %v763, %v831
        %v833 = vpop.f32.mrb[0].mxu0
        %834 = vmatprep.mubr.f32.mxu0 0.0
        %835 = vmatmul.mubr.f32.gmra.mrb[0].mxu0 %v727
        %v836 = vpop.f32.mrb[0].mxu0
        %v837 = vadd.f32 %v763, %v836
        %v838 = vpop.f32.mrb[0].mxu0
        %839 = vmatprep.mubr.f32.mxu0 0.0
        %840 = vmatmul.mubr.f32.gmra.mrb[0].mxu0 %v728
        %v841 = vpop.f32.mrb[0].mxu0
        %v842 = vadd.f32 %v763, %v841
        %v843 = vpop.f32.mrb[0].mxu0
        %844 = vmatprep.mubr.f32.mxu0 0.0
        %845 = vmatmul.mubr.f32.gmra.mrb[0].mxu0 %v729
        %v846 = vpop.f32.mrb[0].mxu0
        %v847 = vadd.f32 %v763, %v846
        %v848 = vpop.f32.mrb[0].mxu0
        %849 = vmatprep.mubr.f32.mxu0 0.0
        %850 = vmatmul.mubr.f32.gmra.mrb[0].mxu0 %v730
        %v851 = vpop.f32.mrb[0].mxu0
        %v852 = vadd.f32 %v763, %v851
        %v853 = vpop.f32.mrb[0].mxu0
        %854 = vmatprep.mubr.f32.mxu0 0.0
        %855 = vmatmul.mubr.f32.gmra.mrb[0].mxu0 %v731
        %v856 = vpop.f32.mrb[0].mxu0
        %v857 = vadd.f32 %v763, %v856
        %v858 = vpop.f32.mrb[0].mxu0
        %859 = vmatprep.mubr.f32.mxu0 0.0
        %860 = vmatmul.mubr.f32.gmra.mrb[0].mxu0 %v732
        %v861 = vpop.f32.mrb[0].mxu0
        %v862 = vadd.f32 %v763, %v861
        %v863 = vpop.f32.mrb[0].mxu0
        %864 = vmatprep.mubr.f32.mxu0 0.0
        %865 = vmatmul.mubr.f32.gmra.mrb[0].mxu0 %v733
        %v866 = vpop.f32.mrb[0].mxu0
        %v867 = vadd.f32 %v763, %v866
        %v868 = vpop.f32.mrb[0].mxu0
        %869 = vmatprep.mubr.f32.mxu0 0.0
        %870 = vmatmul.mubr.f32.gmra.mrb[0].mxu0 %v734
        %v871 = vpop.f32.mrb[0].mxu0
        %v872 = vadd.f32 %v763, %v871
        %v873 = vpop.f32.mrb[0].mxu0
        %874 = vmatprep.mubr.f32.mxu0 0.0
        %875 = vmatmul.mubr.f32.gmra.mrb[0].mxu0 %v735
        %v876 = vpop.f32.mrb[0].mxu0
        %v877 = vadd.f32 %v763, %v876
        %v878 = vpop.f32.mrb[0].mxu0
        %879 = vmatprep.mubr.f32.mxu0 0.0
        %880 = vmatmul.mubr.f32.gmra.mrb[0].mxu0 %v736
        %v881 = vpop.f32.mrb[0].mxu0
        %v882 = vadd.f32 %v763, %v881
        %v883 = vpop.f32.mrb[0].mxu0
        %884 = vmatprep.mubr.f32.mxu0 0.0
        %885 = vmatmul.mubr.f32.gmra.mrb[0].mxu0 %v737
        %v886 = vpop.f32.mrb[0].mxu0
        %v887 = vadd.f32 %v763, %v886
        %v888 = vpop.f32.mrb[0].mxu0
        %889 = vmatprep.mubr.f32.mxu0 0.0
        %890 = vmatmul.mubr.f32.gmra.mrb[0].mxu0 %v738
        %v891 = vpop.f32.mrb[0].mxu0
        %v892 = vadd.f32 %v763, %v891
        %v893 = vpop.f32.mrb[0].mxu0
        %894 = vmatprep.mubr.f32.mxu0 0.0
        %895 = vmatmul.mubr.f32.gmra.mrb[0].mxu0 %v739
        %v896 = vpop.f32.mrb[0].mxu0
        %v897 = vadd.f32 %v763, %v896
        %v898 = vpop.f32.mrb[0].mxu0
        %899 = vmatprep.mubr.f32.mxu0 0.0
        %900 = vmatmul.mubr.f32.gmra.mrb[0].mxu0 %v740
        %v901 = vpop.f32.mrb[0].mxu0
        %v902 = vadd.f32 %v763, %v901
        %v903 = vpop.f32.mrb[0].mxu0
        %904 = vmatprep.mubr.f32.mxu0 0.0
        %905 = vmatmul.mubr.f32.gmra.mrb[0].mxu0 %v741
        %v906 = vpop.f32.mrb[0].mxu0
        %v907 = vadd.f32 %v763, %v906
        %v908 = vpop.f32.mrb[0].mxu0
        %909 = vdwg.mxu0
        %v910 = vmax.f32 %v832, 0.0
        %v911 = vmax.f32 %v837, 0.0
        %v912 = vmax.f32 %v842, 0.0
        %v913 = vmax.f32 %v847, 0.0
        %v914 = vmax.f32 %v852, 0.0
        %v915 = vmax.f32 %v857, 0.0
        %v916 = vmax.f32 %v862, 0.0
        %v917 = vmax.f32 %v867, 0.0
        %v918 = vmax.f32 %v872, 0.0
        %v919 = vmax.f32 %v877, 0.0
        %v920 = vmax.f32 %v882, 0.0
        %v921 = vmax.f32 %v887, 0.0
        %v922 = vmax.f32 %v892, 0.0
        %v923 = vmax.f32 %v897, 0.0
        %v924 = vmax.f32 %v902, 0.0
        %v925 = vmax.f32 %v907, 0.0
        %v926 = vld [vmem:[%s5] sm:$0xff]
        %v927 = vld [vmem:[%s5 + $0x8] sm:$0xff]
        %v928 = vld [vmem:[%s5 + $0x10] sm:$0xff]
        %v929 = vld [vmem:[%s5 + $0x18] sm:$0xff]
        %v930 = vld [vmem:[%s5 + $0x20] sm:$0xff]
        %v931 = vld [vmem:[%s5 + $0x28] sm:$0xff]
        %v932 = vld [vmem:[%s5 + $0x30] sm:$0xff]
        %v933 = vld [vmem:[%s5 + $0x38] sm:$0xff]
        %v934 = vld [vmem:[#allocation5] sm:$0x1]
        %v936 = vlaneseq
        %v937 = vshrl.u32 %v936, 7
        %v938 = vsub.s32 0, %v937
        %v939 = vrot.slane %v934, %v938
        %vm941 = vcmask 523264
        %v943 = vsel %vm941, %v910, 0
        %v946 = vsel %vm941, %v911, 0
        %v949 = vsel %vm941, %v912, 0
        %v952 = vsel %vm941, %v913, 0
        %v955 = vsel %vm941, %v914, 0
        %v958 = vsel %vm941, %v915, 0
        %v961 = vsel %vm941, %v916, 0
        %v964 = vsel %vm941, %v917, 0
        %v967 = vsel %vm941, %v918, 0
        %v970 = vsel %vm941, %v919, 0
        %v973 = vsel %vm941, %v920, 0
        %v976 = vsel %vm941, %v921, 0
        %v979 = vsel %vm941, %v922, 0
        %v982 = vsel %vm941, %v923, 0
        %v985 = vsel %vm941, %v924, 0
        %v988 = vsel %vm941, %v925, 0
        %990 = vmatprep.subr.mxu0 0.0
        %991 = vmatpush1.msra.mxu0 %v926
        %992 = vmatprep.subr.mxu0 0.0
        %993 = vmatpush1.msra.mxu0 %v927
        %994 = vmatprep.subr.mxu0 0.0
        %995 = vmatpush1.msra.mxu0 %v928
        %996 = vmatprep.subr.mxu0 0.0
        %997 = vmatpush1.msra.mxu0 %v929
        %998 = vmatprep.subr.mxu0 0.0
        %999 = vmatpush1.msra.mxu0 %v930
        %1000 = vmatprep.subr.mxu0 0.0
        %1001 = vmatpush1.msra.mxu0 %v931
        %1002 = vmatprep.subr.mxu0 0.0
        %1003 = vmatpush1.msra.mxu0 %v932
        %1004 = vmatprep.subr.mxu0 0.0
        %1005 = vmatpush1.msra.mxu0 %v933
        %1006 = vmatprep.subr.mxu0 0.0
        %1007 = vmatpush1.msra.mxu0 0.0
        %1008 = vmatprep.subr.mxu0 0.0
        %1009 = vmatpush1.msra.mxu0 0.0
        %1010 = vmatprep.subr.mxu0 0.0
        %1011 = vmatpush1.msra.mxu0 0.0
        %1012 = vmatprep.subr.mxu0 0.0
        %1013 = vmatpush1.msra.mxu0 0.0
        %1014 = vmatprep.subr.mxu0 0.0
        %1015 = vmatpush1.msra.mxu0 0.0
        %1016 = vmatprep.subr.mxu0 0.0
        %1017 = vmatpush1.msra.mxu0 0.0
        %1018 = vmatprep.subr.mxu0 0.0
        %1019 = vmatpush1.msra.mxu0 0.0
        %1020 = vmatprep.subr.mxu0 0.0
        %1021 = vmatpush1.msra.mxu0 0.0
        %1022 = vmatprep.subr.mxu0 0.0
        %1023 = vmatpush1.msra.mxu0 0.0
        %1024 = vmatprep.subr.mxu0 0.0
        %1025 = vmatpush1.msra.mxu0 0.0
        %1026 = vmatprep.subr.mxu0 0.0
        %1027 = vmatpush1.msra.mxu0 0.0
        %1028 = vmatprep.subr.mxu0 0.0
        %1029 = vmatpush1.msra.mxu0 0.0
        %1030 = vmatprep.subr.mxu0 0.0
        %1031 = vmatpush1.msra.mxu0 0.0
        %1032 = vmatprep.subr.mxu0 0.0
        %1033 = vmatpush1.msra.mxu0 0.0
        %1034 = vmatprep.subr.mxu0 0.0
        %1035 = vmatpush1.msra.mxu0 0.0
        %1036 = vmatprep.subr.mxu0 0.0
        %1037 = vmatpush1.msra.mxu0 0.0
        %1038 = vmatprep.subr.mxu0 0.0
        %1039 = vmatpush1.msra.mxu0 0.0
        %1040 = vmatprep.subr.mxu0 0.0
        %1041 = vmatpush1.msra.mxu0 0.0
        %1042 = vmatprep.subr.mxu0 0.0
        %1043 = vmatpush1.msra.mxu0 0.0
        %1044 = vmatprep.subr.mxu0 0.0
        %1045 = vmatpush1.msra.mxu0 0.0
        %1046 = vmatprep.subr.mxu0 0.0
        %1047 = vmatpush1.msra.mxu0 0.0
        %1048 = vmatprep.subr.mxu0 0.0
        %1049 = vmatpush1.msra.mxu0 0.0
        %1050 = vmatprep.subr.mxu0 0.0
        %1051 = vmatpush1.msra.mxu0 0.0
        %1052 = vmatprep.subr.mxu0 0.0
        %1053 = vmatpush1.msra.mxu0 0.0
        %1054 = vmatprep.mubr.f32.mxu0 0.0
        %1055 = vmatmul.mubr.f32.gmra.mrb[0].mxu0 %v943
        %v1056 = vpop.f32.mrb[0].mxu0
        %v1057 = vadd.f32 %v939, %v1056
        %v1058 = vpop.f32.mrb[0].mxu0
        %1059 = vmatprep.mubr.f32.mxu0 0.0
        %1060 = vmatmul.mubr.f32.gmra.mrb[0].mxu0 %v946
        %v1061 = vpop.f32.mrb[0].mxu0
        %v1062 = vadd.f32 %v939, %v1061
        %v1063 = vpop.f32.mrb[0].mxu0
        %1064 = vmatprep.mubr.f32.mxu0 0.0
        %1065 = vmatmul.mubr.f32.gmra.mrb[0].mxu0 %v949
        %v1066 = vpop.f32.mrb[0].mxu0
        %v1067 = vadd.f32 %v939, %v1066
        %v1068 = vpop.f32.mrb[0].mxu0
        %1069 = vmatprep.mubr.f32.mxu0 0.0
        %1070 = vmatmul.mubr.f32.gmra.mrb[0].mxu0 %v952
        %v1071 = vpop.f32.mrb[0].mxu0
        %v1072 = vadd.f32 %v939, %v1071
        %v1073 = vpop.f32.mrb[0].mxu0
        %1074 = vmatprep.mubr.f32.mxu0 0.0
        %1075 = vmatmul.mubr.f32.gmra.mrb[0].mxu0 %v955
        %v1076 = vpop.f32.mrb[0].mxu0
        %v1077 = vadd.f32 %v939, %v1076
        %v1078 = vpop.f32.mrb[0].mxu0
        %1079 = vmatprep.mubr.f32.mxu0 0.0
        %1080 = vmatmul.mubr.f32.gmra.mrb[0].mxu0 %v958
        %v1081 = vpop.f32.mrb[0].mxu0
        %v1082 = vadd.f32 %v939, %v1081
        %v1083 = vpop.f32.mrb[0].mxu0
        %1084 = vmatprep.mubr.f32.mxu0 0.0
        %1085 = vmatmul.mubr.f32.gmra.mrb[0].mxu0 %v961
        %v1086 = vpop.f32.mrb[0].mxu0
        %v1087 = vadd.f32 %v939, %v1086
        %v1088 = vpop.f32.mrb[0].mxu0
        %1089 = vmatprep.mubr.f32.mxu0 0.0
        %1090 = vmatmul.mubr.f32.gmra.mrb[0].mxu0 %v964
        %v1091 = vpop.f32.mrb[0].mxu0
        %v1092 = vadd.f32 %v939, %v1091
        %v1093 = vpop.f32.mrb[0].mxu0
        %1094 = vmatprep.mubr.f32.mxu0 0.0
        %1095 = vmatmul.mubr.f32.gmra.mrb[0].mxu0 %v967
        %v1096 = vpop.f32.mrb[0].mxu0
        %v1097 = vadd.f32 %v939, %v1096
        %v1098 = vpop.f32.mrb[0].mxu0
        %1099 = vmatprep.mubr.f32.mxu0 0.0
        %1100 = vmatmul.mubr.f32.gmra.mrb[0].mxu0 %v970
        %v1101 = vpop.f32.mrb[0].mxu0
        %v1102 = vadd.f32 %v939, %v1101
        %v1103 = vpop.f32.mrb[0].mxu0
        %1104 = vmatprep.mubr.f32.mxu0 0.0
        %1105 = vmatmul.mubr.f32.gmra.mrb[0].mxu0 %v973
        %v1106 = vpop.f32.mrb[0].mxu0
        %v1107 = vadd.f32 %v939, %v1106
        %v1108 = vpop.f32.mrb[0].mxu0
        %1109 = vmatprep.mubr.f32.mxu0 0.0
        %1110 = vmatmul.mubr.f32.gmra.mrb[0].mxu0 %v976
        %v1111 = vpop.f32.mrb[0].mxu0
        %v1112 = vadd.f32 %v939, %v1111
        %v1113 = vpop.f32.mrb[0].mxu0
        %1114 = vmatprep.mubr.f32.mxu0 0.0
        %1115 = vmatmul.mubr.f32.gmra.mrb[0].mxu0 %v979
        %v1116 = vpop.f32.mrb[0].mxu0
        %v1117 = vadd.f32 %v939, %v1116
        %v1118 = vpop.f32.mrb[0].mxu0
        %1119 = vmatprep.mubr.f32.mxu0 0.0
        %1120 = vmatmul.mubr.f32.gmra.mrb[0].mxu0 %v982
        %v1121 = vpop.f32.mrb[0].mxu0
        %v1122 = vadd.f32 %v939, %v1121
        %v1123 = vpop.f32.mrb[0].mxu0
        %1124 = vmatprep.mubr.f32.mxu0 0.0
        %1125 = vmatmul.mubr.f32.gmra.mrb[0].mxu0 %v985
        %v1126 = vpop.f32.mrb[0].mxu0
        %v1127 = vadd.f32 %v939, %v1126
        %v1128 = vpop.f32.mrb[0].mxu0
        %1129 = vmatprep.mubr.f32.mxu0 0.0
        %1130 = vmatmul.mubr.f32.gmra.mrb[0].mxu0 %v988
        %v1131 = vpop.f32.mrb[0].mxu0
        %v1132 = vadd.f32 %v939, %v1131
        %v1133 = vpop.f32.mrb[0].mxu0
        %1134 = vdwg.mxu0
        %vm1135 = vcmask 261120
        %1136 = vst.msk [vmem:[%s539] sm:$0xff] %vm1135, %v1057
        %1137 = vst.msk [vmem:[%s539 + $0x8] sm:$0xff] %vm1135, %v1062
        %1138 = vst.msk [vmem:[%s539 + $0x10] sm:$0xff] %vm1135, %v1067
        %1139 = vst.msk [vmem:[%s539 + $0x18] sm:$0xff] %vm1135, %v1072
        %1140 = vst.msk [vmem:[%s539 + $0x20] sm:$0xff] %vm1135, %v1077
        %1141 = vst.msk [vmem:[%s539 + $0x28] sm:$0xff] %vm1135, %v1082
        %1142 = vst.msk [vmem:[%s539 + $0x30] sm:$0xff] %vm1135, %v1087
        %1143 = vst.msk [vmem:[%s539 + $0x38] sm:$0xff] %vm1135, %v1092
        %1144 = vst.msk [vmem:[%s539 + $0x40] sm:$0xff] %vm1135, %v1097
        %1145 = vst.msk [vmem:[%s539 + $0x48] sm:$0xff] %vm1135, %v1102
        %1146 = vst.msk [vmem:[%s539 + $0x50] sm:$0xff] %vm1135, %v1107
        %1147 = vst.msk [vmem:[%s539 + $0x58] sm:$0xff] %vm1135, %v1112
        %1148 = vst.msk [vmem:[%s539 + $0x60] sm:$0xff] %vm1135, %v1117
        %1149 = vst.msk [vmem:[%s539 + $0x68] sm:$0xff] %vm1135, %v1122
        %1150 = vst.msk [vmem:[%s539 + $0x70] sm:$0xff] %vm1135, %v1127
        %1151 = vst.msk [vmem:[%s539 + $0x78] sm:$0xff] %vm1135, %v1132
        %v1152 = vld [vmem:[#allocation7] sm:$0xff]
        %v1153 = vld [vmem:[#allocation7 + $0x8] sm:$0xff]
        %v1154 = vld [vmem:[#allocation7 + $0x10] sm:$0xff]
        %v1155 = vld [vmem:[#allocation7 + $0x18] sm:$0xff]
        %v1156 = vld [vmem:[#allocation8] sm:$0x1]
        %v1158 = vlaneseq
        %v1159 = vshrl.u32 %v1158, 7
        %v1160 = vsub.s32 0, %v1159
        %v1161 = vrot.slane %v1156, %v1160
        %v1164 = vsel %vm1135, %v1057, 0
        %v1167 = vsel %vm1135, %v1062, 0
        %v1170 = vsel %vm1135, %v1067, 0
        %v1173 = vsel %vm1135, %v1072, 0
        %v1176 = vsel %vm1135, %v1077, 0
        %v1179 = vsel %vm1135, %v1082, 0
        %v1182 = vsel %vm1135, %v1087, 0
        %v1185 = vsel %vm1135, %v1092, 0
        %v1188 = vsel %vm1135, %v1097, 0
        %v1191 = vsel %vm1135, %v1102, 0
        %v1194 = vsel %vm1135, %v1107, 0
        %v1197 = vsel %vm1135, %v1112, 0
        %v1200 = vsel %vm1135, %v1117, 0
        %v1203 = vsel %vm1135, %v1122, 0
        %v1206 = vsel %vm1135, %v1127, 0
        %v1209 = vsel %vm1135, %v1132, 0
        %1211 = vmatprep.subr.mxu0 0.0
        %1212 = vmatpush1.msra.mxu0 %v1152
        %1213 = vmatprep.subr.mxu0 0.0
        %1214 = vmatpush1.msra.mxu0 %v1153
        %1215 = vmatprep.subr.mxu0 0.0
        %1216 = vmatpush1.msra.mxu0 %v1154
        %1217 = vmatprep.subr.mxu0 0.0
        %1218 = vmatpush1.msra.mxu0 %v1155
        %1219 = vmatprep.subr.mxu0 0.0
        %1220 = vmatpush1.msra.mxu0 0.0
        %1221 = vmatprep.subr.mxu0 0.0
        %1222 = vmatpush1.msra.mxu0 0.0
        %1223 = vmatprep.subr.mxu0 0.0
        %1224 = vmatpush1.msra.mxu0 0.0
        %1225 = vmatprep.subr.mxu0 0.0
        %1226 = vmatpush1.msra.mxu0 0.0
        %1227 = vmatprep.subr.mxu0 0.0
        %1228 = vmatpush1.msra.mxu0 0.0
        %1229 = vmatprep.subr.mxu0 0.0
        %1230 = vmatpush1.msra.mxu0 0.0
        %1231 = vmatprep.subr.mxu0 0.0
        %1232 = vmatpush1.msra.mxu0 0.0
        %1233 = vmatprep.subr.mxu0 0.0
        %1234 = vmatpush1.msra.mxu0 0.0
        %1235 = vmatprep.subr.mxu0 0.0
        %1236 = vmatpush1.msra.mxu0 0.0
        %1237 = vmatprep.subr.mxu0 0.0
        %1238 = vmatpush1.msra.mxu0 0.0
        %1239 = vmatprep.subr.mxu0 0.0
        %1240 = vmatpush1.msra.mxu0 0.0
        %1241 = vmatprep.subr.mxu0 0.0
        %1242 = vmatpush1.msra.mxu0 0.0
        %1243 = vmatprep.subr.mxu0 0.0
        %1244 = vmatpush1.msra.mxu0 0.0
        %1245 = vmatprep.subr.mxu0 0.0
        %1246 = vmatpush1.msra.mxu0 0.0
        %1247 = vmatprep.subr.mxu0 0.0
        %1248 = vmatpush1.msra.mxu0 0.0
        %1249 = vmatprep.subr.mxu0 0.0
        %1250 = vmatpush1.msra.mxu0 0.0
        %1251 = vmatprep.subr.mxu0 0.0
        %1252 = vmatpush1.msra.mxu0 0.0
        %1253 = vmatprep.subr.mxu0 0.0
        %1254 = vmatpush1.msra.mxu0 0.0
        %1255 = vmatprep.subr.mxu0 0.0
        %1256 = vmatpush1.msra.mxu0 0.0
        %1257 = vmatprep.subr.mxu0 0.0
        %1258 = vmatpush1.msra.mxu0 0.0
        %1259 = vmatprep.subr.mxu0 0.0
        %1260 = vmatpush1.msra.mxu0 0.0
        %1261 = vmatprep.subr.mxu0 0.0
        %1262 = vmatpush1.msra.mxu0 0.0
        %1263 = vmatprep.subr.mxu0 0.0
        %1264 = vmatpush1.msra.mxu0 0.0
        %1265 = vmatprep.subr.mxu0 0.0
        %1266 = vmatpush1.msra.mxu0 0.0
        %1267 = vmatprep.subr.mxu0 0.0
        %1268 = vmatpush1.msra.mxu0 0.0
        %1269 = vmatprep.subr.mxu0 0.0
        %1270 = vmatpush1.msra.mxu0 0.0
        %1271 = vmatprep.subr.mxu0 0.0
        %1272 = vmatpush1.msra.mxu0 0.0
        %1273 = vmatprep.subr.mxu0 0.0
        %1274 = vmatpush1.msra.mxu0 0.0
        %1275 = vmatprep.mubr.f32.mxu0 0.0
        %1276 = vmatmul.mubr.f32.gmra.mrb[0].mxu0 %v1164
        %v1277 = vpop.f32.mrb[0].mxu0
        %v1278 = vadd.f32 %v1161, %v1277
        %v1279 = vpop.f32.mrb[0].mxu0
        %1280 = vmatprep.mubr.f32.mxu0 0.0
        %1281 = vmatmul.mubr.f32.gmra.mrb[0].mxu0 %v1167
        %v1282 = vpop.f32.mrb[0].mxu0
        %v1283 = vadd.f32 %v1161, %v1282
        %v1284 = vpop.f32.mrb[0].mxu0
        %1285 = vmatprep.mubr.f32.mxu0 0.0
        %1286 = vmatmul.mubr.f32.gmra.mrb[0].mxu0 %v1170
        %v1287 = vpop.f32.mrb[0].mxu0
        %v1288 = vadd.f32 %v1161, %v1287
        %v1289 = vpop.f32.mrb[0].mxu0
        %1290 = vmatprep.mubr.f32.mxu0 0.0
        %1291 = vmatmul.mubr.f32.gmra.mrb[0].mxu0 %v1173
        %v1292 = vpop.f32.mrb[0].mxu0
        %v1293 = vadd.f32 %v1161, %v1292
        %v1294 = vpop.f32.mrb[0].mxu0
        %1295 = vmatprep.mubr.f32.mxu0 0.0
        %1296 = vmatmul.mubr.f32.gmra.mrb[0].mxu0 %v1176
        %v1297 = vpop.f32.mrb[0].mxu0
        %v1298 = vadd.f32 %v1161, %v1297
        %v1299 = vpop.f32.mrb[0].mxu0
        %1300 = vmatprep.mubr.f32.mxu0 0.0
        %1301 = vmatmul.mubr.f32.gmra.mrb[0].mxu0 %v1179
        %v1302 = vpop.f32.mrb[0].mxu0
        %v1303 = vadd.f32 %v1161, %v1302
        %v1304 = vpop.f32.mrb[0].mxu0
        %1305 = vmatprep.mubr.f32.mxu0 0.0
        %1306 = vmatmul.mubr.f32.gmra.mrb[0].mxu0 %v1182
        %v1307 = vpop.f32.mrb[0].mxu0
        %v1308 = vadd.f32 %v1161, %v1307
        %v1309 = vpop.f32.mrb[0].mxu0
        %1310 = vmatprep.mubr.f32.mxu0 0.0
        %1311 = vmatmul.mubr.f32.gmra.mrb[0].mxu0 %v1185
        %v1312 = vpop.f32.mrb[0].mxu0
        %v1313 = vadd.f32 %v1161, %v1312
        %v1314 = vpop.f32.mrb[0].mxu0
        %1315 = vmatprep.mubr.f32.mxu0 0.0
        %1316 = vmatmul.mubr.f32.gmra.mrb[0].mxu0 %v1188
        %v1317 = vpop.f32.mrb[0].mxu0
        %v1318 = vadd.f32 %v1161, %v1317
        %v1319 = vpop.f32.mrb[0].mxu0
        %1320 = vmatprep.mubr.f32.mxu0 0.0
        %1321 = vmatmul.mubr.f32.gmra.mrb[0].mxu0 %v1191
        %v1322 = vpop.f32.mrb[0].mxu0
        %v1323 = vadd.f32 %v1161, %v1322
        %v1324 = vpop.f32.mrb[0].mxu0
        %1325 = vmatprep.mubr.f32.mxu0 0.0
        %1326 = vmatmul.mubr.f32.gmra.mrb[0].mxu0 %v1194
        %v1327 = vpop.f32.mrb[0].mxu0
        %v1328 = vadd.f32 %v1161, %v1327
        %v1329 = vpop.f32.mrb[0].mxu0
        %1330 = vmatprep.mubr.f32.mxu0 0.0
        %1331 = vmatmul.mubr.f32.gmra.mrb[0].mxu0 %v1197
        %v1332 = vpop.f32.mrb[0].mxu0
        %v1333 = vadd.f32 %v1161, %v1332
        %v1334 = vpop.f32.mrb[0].mxu0
        %1335 = vmatprep.mubr.f32.mxu0 0.0
        %1336 = vmatmul.mubr.f32.gmra.mrb[0].mxu0 %v1200
        %v1337 = vpop.f32.mrb[0].mxu0
        %v1338 = vadd.f32 %v1161, %v1337
        %v1339 = vpop.f32.mrb[0].mxu0
        %1340 = vmatprep.mubr.f32.mxu0 0.0
        %1341 = vmatmul.mubr.f32.gmra.mrb[0].mxu0 %v1203
        %v1342 = vpop.f32.mrb[0].mxu0
        %v1343 = vadd.f32 %v1161, %v1342
        %v1344 = vpop.f32.mrb[0].mxu0
        %1345 = vmatprep.mubr.f32.mxu0 0.0
        %1346 = vmatmul.mubr.f32.gmra.mrb[0].mxu0 %v1206
        %v1347 = vpop.f32.mrb[0].mxu0
        %v1348 = vadd.f32 %v1161, %v1347
        %v1349 = vpop.f32.mrb[0].mxu0
        %1350 = vmatprep.mubr.f32.mxu0 0.0
        %1351 = vmatmul.mubr.f32.gmra.mrb[0].mxu0 %v1209
        %v1352 = vpop.f32.mrb[0].mxu0
        %v1353 = vadd.f32 %v1161, %v1352
        %v1354 = vpop.f32.mrb[0].mxu0
        %1355 = vdwg.mxu0
        %v1356 = vmax.f32 %v1278, 0.0
        %v1357 = vmax.f32 %v1283, 0.0
        %v1358 = vmax.f32 %v1288, 0.0
        %v1359 = vmax.f32 %v1293, 0.0
        %v1360 = vmax.f32 %v1298, 0.0
        %v1361 = vmax.f32 %v1303, 0.0
        %v1362 = vmax.f32 %v1308, 0.0
        %v1363 = vmax.f32 %v1313, 0.0
        %v1364 = vmax.f32 %v1318, 0.0
        %v1365 = vmax.f32 %v1323, 0.0
        %v1366 = vmax.f32 %v1328, 0.0
        %v1367 = vmax.f32 %v1333, 0.0
        %v1368 = vmax.f32 %v1338, 0.0
        %v1369 = vmax.f32 %v1343, 0.0
        %v1370 = vmax.f32 %v1348, 0.0
        %v1371 = vmax.f32 %v1353, 0.0
        %v1372 = vld [vmem:[%s9] sm:$0xff]
        %v1373 = vld [vmem:[%s9 + $0x8] sm:$0xff]
        %v1374 = vld [vmem:[%s9 + $0x10] sm:$0xff]
        %v1375 = vld [vmem:[%s9 + $0x18] sm:$0xff]
        %v1376 = vld [vmem:[%s9 + $0x20] sm:$0xff]
        %v1377 = vld [vmem:[%s9 + $0x28] sm:$0xff]
        %v1378 = vld [vmem:[%s9 + $0x30] sm:$0xff]
        %v1379 = vld [vmem:[%s9 + $0x38] sm:$0xff]
        %v1380 = vld [vmem:[%s10] sm:$0x1]
        %v1382 = vlaneseq
        %v1383 = vshrl.u32 %v1382, 7
        %v1384 = vsub.s32 0, %v1383
        %v1385 = vrot.slane %v1380, %v1384
        %v1388 = vsel %vm941, %v1356, 0
        %v1391 = vsel %vm941, %v1357, 0
        %v1394 = vsel %vm941, %v1358, 0
        %v1397 = vsel %vm941, %v1359, 0
        %v1400 = vsel %vm941, %v1360, 0
        %v1403 = vsel %vm941, %v1361, 0
        %v1406 = vsel %vm941, %v1362, 0
        %v1409 = vsel %vm941, %v1363, 0
        %v1412 = vsel %vm941, %v1364, 0
        %v1415 = vsel %vm941, %v1365, 0
        %v1418 = vsel %vm941, %v1366, 0
        %v1421 = vsel %vm941, %v1367, 0
        %v1424 = vsel %vm941, %v1368, 0
        %v1427 = vsel %vm941, %v1369, 0
        %v1430 = vsel %vm941, %v1370, 0
        %v1433 = vsel %vm941, %v1371, 0
        %1435 = vmatprep.subr.mxu0 0.0
        %1436 = vmatpush1.msra.mxu0 %v1372
        %1437 = vmatprep.subr.mxu0 0.0
        %1438 = vmatpush1.msra.mxu0 %v1373
        %1439 = vmatprep.subr.mxu0 0.0
        %1440 = vmatpush1.msra.mxu0 %v1374
        %1441 = vmatprep.subr.mxu0 0.0
        %1442 = vmatpush1.msra.mxu0 %v1375
        %1443 = vmatprep.subr.mxu0 0.0
        %1444 = vmatpush1.msra.mxu0 %v1376
        %1445 = vmatprep.subr.mxu0 0.0
        %1446 = vmatpush1.msra.mxu0 %v1377
        %1447 = vmatprep.subr.mxu0 0.0
        %1448 = vmatpush1.msra.mxu0 %v1378
        %1449 = vmatprep.subr.mxu0 0.0
        %1450 = vmatpush1.msra.mxu0 %v1379
        %1451 = vmatprep.subr.mxu0 0.0
        %1452 = vmatpush1.msra.mxu0 0.0
        %1453 = vmatprep.subr.mxu0 0.0
        %1454 = vmatpush1.msra.mxu0 0.0
        %1455 = vmatprep.subr.mxu0 0.0
        %1456 = vmatpush1.msra.mxu0 0.0
        %1457 = vmatprep.subr.mxu0 0.0
        %1458 = vmatpush1.msra.mxu0 0.0
        %1459 = vmatprep.subr.mxu0 0.0
        %1460 = vmatpush1.msra.mxu0 0.0
        %1461 = vmatprep.subr.mxu0 0.0
        %1462 = vmatpush1.msra.mxu0 0.0
        %1463 = vmatprep.subr.mxu0 0.0
        %1464 = vmatpush1.msra.mxu0 0.0
        %1465 = vmatprep.subr.mxu0 0.0
        %1466 = vmatpush1.msra.mxu0 0.0
        %1467 = vmatprep.subr.mxu0 0.0
        %1468 = vmatpush1.msra.mxu0 0.0
        %1469 = vmatprep.subr.mxu0 0.0
        %1470 = vmatpush1.msra.mxu0 0.0
        %1471 = vmatprep.subr.mxu0 0.0
        %1472 = vmatpush1.msra.mxu0 0.0
        %1473 = vmatprep.subr.mxu0 0.0
        %1474 = vmatpush1.msra.mxu0 0.0
        %1475 = vmatprep.subr.mxu0 0.0
        %1476 = vmatpush1.msra.mxu0 0.0
        %1477 = vmatprep.subr.mxu0 0.0
        %1478 = vmatpush1.msra.mxu0 0.0
        %1479 = vmatprep.subr.mxu0 0.0
        %1480 = vmatpush1.msra.mxu0 0.0
        %1481 = vmatprep.subr.mxu0 0.0
        %1482 = vmatpush1.msra.mxu0 0.0
        %1483 = vmatprep.subr.mxu0 0.0
        %1484 = vmatpush1.msra.mxu0 0.0
        %1485 = vmatprep.subr.mxu0 0.0
        %1486 = vmatpush1.msra.mxu0 0.0
        %1487 = vmatprep.subr.mxu0 0.0
        %1488 = vmatpush1.msra.mxu0 0.0
        %1489 = vmatprep.subr.mxu0 0.0
        %1490 = vmatpush1.msra.mxu0 0.0
        %1491 = vmatprep.subr.mxu0 0.0
        %1492 = vmatpush1.msra.mxu0 0.0
        %1493 = vmatprep.subr.mxu0 0.0
        %1494 = vmatpush1.msra.mxu0 0.0
        %1495 = vmatprep.subr.mxu0 0.0
        %1496 = vmatpush1.msra.mxu0 0.0
        %1497 = vmatprep.subr.mxu0 0.0
        %1498 = vmatpush1.msra.mxu0 0.0
        %1499 = vmatprep.mubr.f32.mxu0 0.0
        %1500 = vmatmul.mubr.f32.gmra.mrb[0].mxu0 %v1388
        %v1501 = vpop.f32.mrb[0].mxu0
        %v1502 = vadd.f32 %v1385, %v1501
        %v1503 = vpop.f32.mrb[0].mxu0
        %1504 = vmatprep.mubr.f32.mxu0 0.0
        %1505 = vmatmul.mubr.f32.gmra.mrb[0].mxu0 %v1391
        %v1506 = vpop.f32.mrb[0].mxu0
        %v1507 = vadd.f32 %v1385, %v1506
        %v1508 = vpop.f32.mrb[0].mxu0
        %1509 = vmatprep.mubr.f32.mxu0 0.0
        %1510 = vmatmul.mubr.f32.gmra.mrb[0].mxu0 %v1394
        %v1511 = vpop.f32.mrb[0].mxu0
        %v1512 = vadd.f32 %v1385, %v1511
        %v1513 = vpop.f32.mrb[0].mxu0
        %1514 = vmatprep.mubr.f32.mxu0 0.0
        %1515 = vmatmul.mubr.f32.gmra.mrb[0].mxu0 %v1397
        %v1516 = vpop.f32.mrb[0].mxu0
        %v1517 = vadd.f32 %v1385, %v1516
        %v1518 = vpop.f32.mrb[0].mxu0
        %1519 = vmatprep.mubr.f32.mxu0 0.0
        %1520 = vmatmul.mubr.f32.gmra.mrb[0].mxu0 %v1400
        %v1521 = vpop.f32.mrb[0].mxu0
        %v1522 = vadd.f32 %v1385, %v1521
        %v1523 = vpop.f32.mrb[0].mxu0
        %1524 = vmatprep.mubr.f32.mxu0 0.0
        %1525 = vmatmul.mubr.f32.gmra.mrb[0].mxu0 %v1403
        %v1526 = vpop.f32.mrb[0].mxu0
        %v1527 = vadd.f32 %v1385, %v1526
        %v1528 = vpop.f32.mrb[0].mxu0
        %1529 = vmatprep.mubr.f32.mxu0 0.0
        %1530 = vmatmul.mubr.f32.gmra.mrb[0].mxu0 %v1406
        %v1531 = vpop.f32.mrb[0].mxu0
        %v1532 = vadd.f32 %v1385, %v1531
        %v1533 = vpop.f32.mrb[0].mxu0
        %1534 = vmatprep.mubr.f32.mxu0 0.0
        %1535 = vmatmul.mubr.f32.gmra.mrb[0].mxu0 %v1409
        %v1536 = vpop.f32.mrb[0].mxu0
        %v1537 = vadd.f32 %v1385, %v1536
        %v1538 = vpop.f32.mrb[0].mxu0
        %1539 = vmatprep.mubr.f32.mxu0 0.0
        %1540 = vmatmul.mubr.f32.gmra.mrb[0].mxu0 %v1412
        %v1541 = vpop.f32.mrb[0].mxu0
        %v1542 = vadd.f32 %v1385, %v1541
        %v1543 = vpop.f32.mrb[0].mxu0
        %1544 = vmatprep.mubr.f32.mxu0 0.0
        %1545 = vmatmul.mubr.f32.gmra.mrb[0].mxu0 %v1415
        %v1546 = vpop.f32.mrb[0].mxu0
        %v1547 = vadd.f32 %v1385, %v1546
        %v1548 = vpop.f32.mrb[0].mxu0
        %1549 = vmatprep.mubr.f32.mxu0 0.0
        %1550 = vmatmul.mubr.f32.gmra.mrb[0].mxu0 %v1418
        %v1551 = vpop.f32.mrb[0].mxu0
        %v1552 = vadd.f32 %v1385, %v1551
        %v1553 = vpop.f32.mrb[0].mxu0
        %1554 = vmatprep.mubr.f32.mxu0 0.0
        %1555 = vmatmul.mubr.f32.gmra.mrb[0].mxu0 %v1421
        %v1556 = vpop.f32.mrb[0].mxu0
        %v1557 = vadd.f32 %v1385, %v1556
        %v1558 = vpop.f32.mrb[0].mxu0
        %1559 = vmatprep.mubr.f32.mxu0 0.0
        %1560 = vmatmul.mubr.f32.gmra.mrb[0].mxu0 %v1424
        %v1561 = vpop.f32.mrb[0].mxu0
        %v1562 = vadd.f32 %v1385, %v1561
        %v1563 = vpop.f32.mrb[0].mxu0
        %1564 = vmatprep.mubr.f32.mxu0 0.0
        %1565 = vmatmul.mubr.f32.gmra.mrb[0].mxu0 %v1427
        %v1566 = vpop.f32.mrb[0].mxu0
        %v1567 = vadd.f32 %v1385, %v1566
        %v1568 = vpop.f32.mrb[0].mxu0
        %1569 = vmatprep.mubr.f32.mxu0 0.0
        %1570 = vmatmul.mubr.f32.gmra.mrb[0].mxu0 %v1430
        %v1571 = vpop.f32.mrb[0].mxu0
        %v1572 = vadd.f32 %v1385, %v1571
        %v1573 = vpop.f32.mrb[0].mxu0
        %1574 = vmatprep.mubr.f32.mxu0 0.0
        %1575 = vmatmul.mubr.f32.gmra.mrb[0].mxu0 %v1433
        %v1576 = vpop.f32.mrb[0].mxu0
        %v1577 = vadd.f32 %v1385, %v1576
        %v1578 = vpop.f32.mrb[0].mxu0
        %1579 = vdwg.mxu0
        %v1580 = vmax.f32 %v1502, 0.0
        %v1581 = vmax.f32 %v1507, 0.0
        %v1582 = vmax.f32 %v1512, 0.0
        %v1583 = vmax.f32 %v1517, 0.0
        %v1584 = vmax.f32 %v1522, 0.0
        %v1585 = vmax.f32 %v1527, 0.0
        %v1586 = vmax.f32 %v1532, 0.0
        %v1587 = vmax.f32 %v1537, 0.0
        %v1588 = vmax.f32 %v1542, 0.0
        %v1589 = vmax.f32 %v1547, 0.0
        %v1590 = vmax.f32 %v1552, 0.0
        %v1591 = vmax.f32 %v1557, 0.0
        %v1592 = vmax.f32 %v1562, 0.0
        %v1593 = vmax.f32 %v1567, 0.0
        %v1594 = vmax.f32 %v1572, 0.0
        %v1595 = vmax.f32 %v1577, 0.0
        %v1596 = vld [vmem:[%s11] sm:$0xff]
        %v1597 = vld [vmem:[%s11 + $0x8] sm:$0xff]
        %v1598 = vld [vmem:[%s11 + $0x10] sm:$0xff]
        %v1599 = vld [vmem:[%s11 + $0x18] sm:$0xff]
        %v1600 = vld [vmem:[%s11 + $0x20] sm:$0xff]
        %v1601 = vld [vmem:[%s11 + $0x28] sm:$0xff]
        %v1602 = vld [vmem:[%s11 + $0x30] sm:$0xff]
        %v1603 = vld [vmem:[%s11 + $0x38] sm:$0xff]
        %v1604 = vld [vmem:[%s11 + $0x40] sm:$0xff]
        %v1605 = vld [vmem:[%s11 + $0x48] sm:$0xff]
        %v1606 = vld [vmem:[%s11 + $0x50] sm:$0xff]
        %v1607 = vld [vmem:[%s11 + $0x58] sm:$0xff]
        %v1608 = vld [vmem:[%s11 + $0x60] sm:$0xff]
        %v1609 = vld [vmem:[%s11 + $0x68] sm:$0xff]
        %v1610 = vld [vmem:[%s11 + $0x70] sm:$0xff]
        %v1611 = vld [vmem:[%s11 + $0x78] sm:$0xff]
        %v1612 = vld [vmem:[%s12] sm:$0x1]
        %v1614 = vlaneseq
        %v1615 = vshrl.u32 %v1614, 7
        %v1616 = vsub.s32 0, %v1615
        %v1617 = vrot.slane %v1612, %v1616
        %1619 = vmatprep.subr.mxu0 0.0
        %1620 = vmatpush1.msra.mxu0 %v1596
        %1621 = vmatprep.subr.mxu0 0.0
        %1622 = vmatpush1.msra.mxu0 %v1597
        %1623 = vmatprep.subr.mxu0 0.0
        %1624 = vmatpush1.msra.mxu0 %v1598
        %1625 = vmatprep.subr.mxu0 0.0
        %1626 = vmatpush1.msra.mxu0 %v1599
        %1627 = vmatprep.subr.mxu0 0.0
        %1628 = vmatpush1.msra.mxu0 %v1600
        %1629 = vmatprep.subr.mxu0 0.0
        %1630 = vmatpush1.msra.mxu0 %v1601
        %1631 = vmatprep.subr.mxu0 0.0
        %1632 = vmatpush1.msra.mxu0 %v1602
        %1633 = vmatprep.subr.mxu0 0.0
        %1634 = vmatpush1.msra.mxu0 %v1603
        %1635 = vmatprep.subr.mxu0 0.0
        %1636 = vmatpush1.msra.mxu0 %v1604
        %1637 = vmatprep.subr.mxu0 0.0
        %1638 = vmatpush1.msra.mxu0 %v1605
        %1639 = vmatprep.subr.mxu0 0.0
        %1640 = vmatpush1.msra.mxu0 %v1606
        %1641 = vmatprep.subr.mxu0 0.0
        %1642 = vmatpush1.msra.mxu0 %v1607
        %1643 = vmatprep.subr.mxu0 0.0
        %1644 = vmatpush1.msra.mxu0 %v1608
        %1645 = vmatprep.subr.mxu0 0.0
        %1646 = vmatpush1.msra.mxu0 %v1609
        %1647 = vmatprep.subr.mxu0 0.0
        %1648 = vmatpush1.msra.mxu0 %v1610
        %1649 = vmatprep.subr.mxu0 0.0
        %1650 = vmatpush1.msra.mxu0 %v1611
        %1651 = vmatprep.subr.mxu0 0.0
        %1652 = vmatpush1.msra.mxu0 0.0
        %1653 = vmatprep.subr.mxu0 0.0
        %1654 = vmatpush1.msra.mxu0 0.0
        %1655 = vmatprep.subr.mxu0 0.0
        %1656 = vmatpush1.msra.mxu0 0.0
        %1657 = vmatprep.subr.mxu0 0.0
        %1658 = vmatpush1.msra.mxu0 0.0
        %1659 = vmatprep.subr.mxu0 0.0
        %1660 = vmatpush1.msra.mxu0 0.0
        %1661 = vmatprep.subr.mxu0 0.0
        %1662 = vmatpush1.msra.mxu0 0.0
        %1663 = vmatprep.subr.mxu0 0.0
        %1664 = vmatpush1.msra.mxu0 0.0
        %1665 = vmatprep.subr.mxu0 0.0
        %1666 = vmatpush1.msra.mxu0 0.0
        %1667 = vmatprep.subr.mxu0 0.0
        %1668 = vmatpush1.msra.mxu0 0.0
        %1669 = vmatprep.subr.mxu0 0.0
        %1670 = vmatpush1.msra.mxu0 0.0
        %1671 = vmatprep.subr.mxu0 0.0
        %1672 = vmatpush1.msra.mxu0 0.0
        %1673 = vmatprep.subr.mxu0 0.0
        %1674 = vmatpush1.msra.mxu0 0.0
        %1675 = vmatprep.subr.mxu0 0.0
        %1676 = vmatpush1.msra.mxu0 0.0
        %1677 = vmatprep.subr.mxu0 0.0
        %1678 = vmatpush1.msra.mxu0 0.0
        %1679 = vmatprep.subr.mxu0 0.0
        %1680 = vmatpush1.msra.mxu0 0.0
        %1681 = vmatprep.subr.mxu0 0.0
        %1682 = vmatpush1.msra.mxu0 0.0
        %1683 = vmatprep.mubr.f32.mxu0 0.0
        %1684 = vmatmul.mubr.f32.gmra.mrb[0].mxu0 %v1580
        %v1685 = vpop.f32.mrb[0].mxu0
        %v1686 = vadd.f32 %v1617, %v1685
        %v1687 = vpop.f32.mrb[0].mxu0
        %1688 = vmatprep.mubr.f32.mxu0 0.0
        %1689 = vmatmul.mubr.f32.gmra.mrb[0].mxu0 %v1581
        %v1690 = vpop.f32.mrb[0].mxu0
        %v1691 = vadd.f32 %v1617, %v1690
        %v1692 = vpop.f32.mrb[0].mxu0
        %1693 = vmatprep.mubr.f32.mxu0 0.0
        %1694 = vmatmul.mubr.f32.gmra.mrb[0].mxu0 %v1582
        %v1695 = vpop.f32.mrb[0].mxu0
        %v1696 = vadd.f32 %v1617, %v1695
        %v1697 = vpop.f32.mrb[0].mxu0
        %1698 = vmatprep.mubr.f32.mxu0 0.0
        %1699 = vmatmul.mubr.f32.gmra.mrb[0].mxu0 %v1583
        %v1700 = vpop.f32.mrb[0].mxu0
        %v1701 = vadd.f32 %v1617, %v1700
        %v1702 = vpop.f32.mrb[0].mxu0
        %1703 = vmatprep.mubr.f32.mxu0 0.0
        %1704 = vmatmul.mubr.f32.gmra.mrb[0].mxu0 %v1584
        %v1705 = vpop.f32.mrb[0].mxu0
        %v1706 = vadd.f32 %v1617, %v1705
        %v1707 = vpop.f32.mrb[0].mxu0
        %1708 = vmatprep.mubr.f32.mxu0 0.0
        %1709 = vmatmul.mubr.f32.gmra.mrb[0].mxu0 %v1585
        %v1710 = vpop.f32.mrb[0].mxu0
        %v1711 = vadd.f32 %v1617, %v1710
        %v1712 = vpop.f32.mrb[0].mxu0
        %1713 = vmatprep.mubr.f32.mxu0 0.0
        %1714 = vmatmul.mubr.f32.gmra.mrb[0].mxu0 %v1586
        %v1715 = vpop.f32.mrb[0].mxu0
        %v1716 = vadd.f32 %v1617, %v1715
        %v1717 = vpop.f32.mrb[0].mxu0
        %1718 = vmatprep.mubr.f32.mxu0 0.0
        %1719 = vmatmul.mubr.f32.gmra.mrb[0].mxu0 %v1587
        %v1720 = vpop.f32.mrb[0].mxu0
        %v1721 = vadd.f32 %v1617, %v1720
        %v1722 = vpop.f32.mrb[0].mxu0
        %1723 = vmatprep.mubr.f32.mxu0 0.0
        %1724 = vmatmul.mubr.f32.gmra.mrb[0].mxu0 %v1588
        %v1725 = vpop.f32.mrb[0].mxu0
        %v1726 = vadd.f32 %v1617, %v1725
        %v1727 = vpop.f32.mrb[0].mxu0
        %1728 = vmatprep.mubr.f32.mxu0 0.0
        %1729 = vmatmul.mubr.f32.gmra.mrb[0].mxu0 %v1589
        %v1730 = vpop.f32.mrb[0].mxu0
        %v1731 = vadd.f32 %v1617, %v1730
        %v1732 = vpop.f32.mrb[0].mxu0
        %1733 = vmatprep.mubr.f32.mxu0 0.0
        %1734 = vmatmul.mubr.f32.gmra.mrb[0].mxu0 %v1590
        %v1735 = vpop.f32.mrb[0].mxu0
        %v1736 = vadd.f32 %v1617, %v1735
        %v1737 = vpop.f32.mrb[0].mxu0
        %1738 = vmatprep.mubr.f32.mxu0 0.0
        %1739 = vmatmul.mubr.f32.gmra.mrb[0].mxu0 %v1591
        %v1740 = vpop.f32.mrb[0].mxu0
        %v1741 = vadd.f32 %v1617, %v1740
        %v1742 = vpop.f32.mrb[0].mxu0
        %1743 = vmatprep.mubr.f32.mxu0 0.0
        %1744 = vmatmul.mubr.f32.gmra.mrb[0].mxu0 %v1592
        %v1745 = vpop.f32.mrb[0].mxu0
        %v1746 = vadd.f32 %v1617, %v1745
        %v1747 = vpop.f32.mrb[0].mxu0
        %1748 = vmatprep.mubr.f32.mxu0 0.0
        %1749 = vmatmul.mubr.f32.gmra.mrb[0].mxu0 %v1593
        %v1750 = vpop.f32.mrb[0].mxu0
        %v1751 = vadd.f32 %v1617, %v1750
        %v1752 = vpop.f32.mrb[0].mxu0
        %1753 = vmatprep.mubr.f32.mxu0 0.0
        %1754 = vmatmul.mubr.f32.gmra.mrb[0].mxu0 %v1594
        %v1755 = vpop.f32.mrb[0].mxu0
        %v1756 = vadd.f32 %v1617, %v1755
        %v1757 = vpop.f32.mrb[0].mxu0
        %1758 = vmatprep.mubr.f32.mxu0 0.0
        %1759 = vmatmul.mubr.f32.gmra.mrb[0].mxu0 %v1595
        %v1760 = vpop.f32.mrb[0].mxu0
        %v1761 = vadd.f32 %v1617, %v1760
        %v1762 = vpop.f32.mrb[0].mxu0
        %1763 = vdwg.mxu0
        %1764 = vst [vmem:[%s533] sm:$0xff] %v1686
        %1765 = vst [vmem:[%s533 + $0x8] sm:$0xff] %v1691
        %1766 = vst [vmem:[%s533 + $0x10] sm:$0xff] %v1696
        %1767 = vst [vmem:[%s533 + $0x18] sm:$0xff] %v1701
        %1768 = vst [vmem:[%s533 + $0x20] sm:$0xff] %v1706
        %1769 = vst [vmem:[%s533 + $0x28] sm:$0xff] %v1711
        %1770 = vst [vmem:[%s533 + $0x30] sm:$0xff] %v1716
        %1771 = vst [vmem:[%s533 + $0x38] sm:$0xff] %v1721
        %1772 = vst [vmem:[%s533 + $0x40] sm:$0xff] %v1726
        %1773 = vst [vmem:[%s533 + $0x48] sm:$0xff] %v1731
        %1774 = vst [vmem:[%s533 + $0x50] sm:$0xff] %v1736
        %1775 = vst [vmem:[%s533 + $0x58] sm:$0xff] %v1741
        %1776 = vst [vmem:[%s533 + $0x60] sm:$0xff] %v1746
        %1777 = vst [vmem:[%s533 + $0x68] sm:$0xff] %v1751
        %1778 = vst [vmem:[%s533 + $0x70] sm:$0xff] %v1756
        %1779 = vst [vmem:[%s533 + $0x78] sm:$0xff] %v1761
        %s1780 = smul.u32 16, %s34
        %p1781 = scmp.lt.s32.totalorder %s1780, 63
        %s1782 = scalar_select %p1781, %s1780, 63
        %s1783 = smul.addr %s1782, 8
        %s1784 = scalar_lea.vmem %s13, %s1783
        %s1785 = sand.u32 %s346, 1
        %s1786 = scalar_lea.sflag [#allocation4], %s1785
        %s1787 = sand.u32 %s346, 1
        %s1788 = smul.addr %s1787, 128
        %s1789 = scalar_lea.vmem [#allocation10], %s1788
        // Predicated region
        $region89: #{autoencoder_forward.1} parent=71 // pred_check
          %p1790 = pneg %p330
        $region90: #{autoencoder_forward.1} parent=71 // pred_check_branch
          %1792 = sbr.rel (%p1790) target = $region92
        $region91: #{autoencoder_forward.1} parent=71 // pred_region
          %s1793 = smul.u32 16, %s34
        $region92: #{autoencoder_forward.1} parent=71 // pred_fallthru
          _
        // Predicated region
        $region93: #{autoencoder_forward.1} parent=71 // pred_check
          %p1794 = pneg %p356
        $region94: #{autoencoder_forward.1} parent=71 // pred_check_branch
          %1796 = sbr.rel (%p1794) target = $region96
        $region95: #{autoencoder_forward.1} parent=71 // pred_region
          %s1797 = smul.u32 16, %s34
          %s1799 = ssub.s32 2048, 2048
          %1800 = vsyncadd %s1786, %s1799
          %s1801 = smul.addr %s1797, 128
          %s1802 = scalar_lea.hbm %s14, %s1801
          %s1803 = sshll.u32 %s1789, 4
          %s1804 = int_to_ptr.vmem [resolvable:$true] %s1803
          %1809 = dma.vmem_to_hbm [thread:$0]  %s1804, 2048, %s1802, %s1786, 128, 128, 8
        $region96: #{autoencoder_forward.1} parent=71 // pred_fallthru
          _
      $region72: #{autoencoder_forward.1} parent=5 // pred_fallthru
        _
      %p1810 = scmp.le.s32.totalorder 2, %s29
      // Predicated region
      $region97: #{autoencoder_forward.1} parent=5 // pred_check
        %p1811 = pneg %p1810
      $region98: #{autoencoder_forward.1} parent=5 // pred_check_branch
        %1813 = sbr.rel (%p1811) target = $region100
      $region99: #{autoencoder_forward.1} parent=5 // pred_region
        %s1814 = ssub.s32 %s29, 2
        // Predicated region
        $region101: #{autoencoder_forward.1} parent=99 // pred_check
          %p1815 = pneg %p336
        $region102: #{autoencoder_forward.1} parent=99 // pred_check_branch
          %1817 = sbr.rel (%p1815) target = $region104
        $region103: #{autoencoder_forward.1} parent=99 // pred_region
          %s1818 = smul.u32 16, %s35
          %p1819 = scmp.lt.s32.totalorder %s1818, 63
          %s1820 = scalar_select %p1819, %s1818, 63
          %s1821 = smul.addr %s1820, 8
          %s1822 = scalar_lea.vmem %s13, %s1821
        $region104: #{autoencoder_forward.1} parent=99 // pred_fallthru
          _
        // Predicated region
        $region105: #{autoencoder_forward.1} parent=99 // pred_check
          %p1823 = pneg %p362
        $region106: #{autoencoder_forward.1} parent=99 // pred_check_branch
          %1825 = sbr.rel (%p1823) target = $region108
        $region107: #{autoencoder_forward.1} parent=99 // pred_region
          %s1826 = sand.u32 %s347, 1
          %s1827 = scalar_lea.sflag [#allocation4], %s1826
          %s1828 = sand.u32 %s347, 1
          %s1829 = smul.addr %s1828, 128
          %s1830 = scalar_lea.vmem [#allocation10], %s1829
          %1831 = dma.done %s1827, 2048
        $region108: #{autoencoder_forward.1} parent=99 // pred_fallthru
          _
      $region100: #{autoencoder_forward.1} parent=5 // pred_fallthru
        _
    $region6: #{autoencoder_forward.1} parent=1 // loop_footer
      %s33 = sadd.s32 1, %s29
    $region7: #{autoencoder_forward.1} parent=1 // loop_footer_branch
      %28 = sbr.rel target = $region3
    $region8: #{autoencoder_forward.1} parent=1 // loop_exit
      _
    %1832 = vsyncpa [#allocation3], 1
    %s1833 = scalar_lea.sflag [#allocation3], 1
    %1834 = vsyncpa %s1833, 1
    %1835 = vsyncpa [#allocation6], 1
    %1836 = vsyncpa [#allocation9], 1
    %1837 = vsyncpa [#allocation4], 1
    %s1838 = scalar_lea.sflag [#allocation4], 1
    %1839 = vsyncpa %s1838, 1

</llo_original>
